<compile_context>
chip_gen: v7x
topology: tpu7x:2x2x1
jax: 0.10.0
libtpu: 0.0.40
codegen_flags: <defaults>
</compile_context>

<pallas_src>
import math

import jax
import jax.numpy as jnp
from jax.experimental import pallas as pl
from jax.experimental.pallas import tpu as pltpu


# ----------------------------------------------------------------------------
# Hardware-aware budgets
# ----------------------------------------------------------------------------
def _tpu_budgets():
    """Returns (per-buffer block budget, scoped-VMEM cap) in bytes."""
    vmem_cap = 128 * 1024 * 1024
    try:
        info = pltpu.get_tpu_info()
        vmem_cap = int(getattr(info, "vmem_capacity_bytes", vmem_cap))
    except Exception:  # not on a TPU / interpret mode
        pass
    if vmem_cap <= 64 * 1024 * 1024:
        # v7x-like: 64 MiB physical VMEM per TensorCore -> modest blocks and a
        # conservative scoped cap leave headroom for compiler scratch and the
        # in-kernel transpose temporary.
        return 2 * 1024 * 1024, 48 * 1024 * 1024
    # v5e / v6e: 128 MiB physical VMEM -> bigger blocks amortise the ~0.35 us
    # fixed per-grid-step cost (dominant on a mem-bound copy).
    return 4 * 1024 * 1024, 96 * 1024 * 1024


def _vmem_limit(block_bytes: int, vmem_cap: int) -> int:
    # in + out double-buffered (4 blocks) + one block-sized transpose temp
    # + 2 MiB margin, floored at the 32 MiB scoped default.
    need = 5 * block_bytes + (2 << 20)
    return int(min(vmem_cap, max(32 << 20, need)))


def _sublane_align(itemsize: int) -> int:
    # Native sublane tiling: 8 rows (f32), 16 (bf16), 32 (int8 / fp8).
    return 8 * max(1, 4 // max(1, itemsize))


# ----------------------------------------------------------------------------
# Kernel bodies
# ----------------------------------------------------------------------------
def _copy_kernel(x_ref, o_ref):
    # Pure relabel: the axis swap lives entirely in the output index_map.
    o_ref[...] = x_ref[...]


def _xpose_kernel(x_ref, o_ref):
    # x_ref block: (l, A_blk, m, B_blk) ; o_ref block: (l, B_blk, m, A_blk).
    # Per-(l, m) 2-D transposes keep the lowering on the classic XLU path.
    l_blk, _, m_blk, _ = x_ref.shape
    for l in range(l_blk):            # static unroll, bounded by the tiler
        for m in range(m_blk):
            o_ref[l, :, m, :] = jnp.transpose(x_ref[l, :, m, :])


# ----------------------------------------------------------------------------
# Relabel path: neither swapped axis is the lane axis (T > 1)
# ----------------------------------------------------------------------------
def _relabel_copy(x, out_shape, L, A, M, B, T, budget_elems, itemsize, vmem_cap):
    x6 = x.reshape(L, A, M, B, 1, T)
    perm = (0, 3, 2, 1, 4, 5)                  # swap A <-> B
    out6 = tuple(x6.shape[p] for p in perm)    # (L, B, M, A, 1, T)

    # Lane tile: full T when it fits the budget, else a multiple of 128
    # (remainder handled by the cdiv grid with a masked edge block).
    if T <= budget_elems:
        t_blk = T
    else:
        t_blk = max(128, (budget_elems // 128) * 128)
    rem = max(1, budget_elems // t_blk)
    m_blk = min(M, rem)
    rem = max(1, rem // m_blk)
    l_blk = min(L, rem)

    blocks = [l_blk, 1, m_blk, 1, 1, t_blk]
    sizes = [L, A, M, B, 1, T]

    # Grid ordered output-major (output layout is (L, B, M, A, 1, T)) so the
    # fastest-varying grid axis writes contiguous HBM output slabs.
    order = [0, 3, 2, 1, 5]
    grid_dims = [d for d in order if pl.cdiv(sizes[d], blocks[d]) > 1]

    if grid_dims:
        grid = tuple(pl.cdiv(sizes[d], blocks[d]) for d in grid_dims)

        def in_map(*gids):
            idx = [0] * 6
            for g, d in zip(gids, grid_dims):
                idx[d] = g
            return tuple(idx)

        def out_map(*gids):
            idx = [0] * 6
            for g, d in zip(gids, grid_dims):
                idx[d] = g
            return tuple(idx[p] for p in perm)
    else:
        grid = (1,)

        def in_map(i):
            return (0,) * 6

        def out_map(i):
            return (0,) * 6

    in_block = tuple(blocks)
    out_block = tuple(blocks[p] for p in perm)
    blk_bytes = math.prod(in_block) * itemsize

    y6 = pl.pallas_call(
        _copy_kernel,
        out_shape=jax.ShapeDtypeStruct(out6, x.dtype),
        grid=grid,
        in_specs=[pl.BlockSpec(in_block, in_map)],
        out_specs=pl.BlockSpec(out_block, out_map),
        compiler_params=pltpu.CompilerParams(
            dimension_semantics=("parallel",) * len(grid),
            vmem_limit_bytes=_vmem_limit(blk_bytes, vmem_cap),
        ),
    )(x6)
    return y6.reshape(out_shape)


# ----------------------------------------------------------------------------
# Transpose path: the lane axis is one of the swapped axes (T == 1)
# ----------------------------------------------------------------------------
def _lane_transpose(x, out_shape, L, A, M, B, budget_elems, itemsize, sub,
                    vmem_cap):
    x4 = x.reshape(L, A, M, B)
    perm = (0, 3, 2, 1)
    out4 = (L, B, M, A)

    # M is the sublane dim of BOTH input and output blocks -> aligned or full.
    m_blk = M if M <= sub else sub
    # A is the output lane dim, B the input lane dim -> multiple of 128 or full.
    cap = max(128, (int(math.isqrt(max(1, budget_elems // m_blk))) // 128) * 128)
    a_blk = A if A <= cap else cap
    b_blk = B if B <= cap else cap
    # Fold leading L into the block while it fits the budget and keeps the
    # static unroll of the body small.
    unit = a_blk * m_blk * b_blk
    l_blk = min(L, max(1, min(32 // m_blk, budget_elems // unit)))

    blocks = [l_blk, a_blk, m_blk, b_blk]
    sizes = [L, A, M, B]
    order = [0, 3, 2, 1]              # output-major -> A-tiles vary fastest
    grid_dims = [d for d in order if pl.cdiv(sizes[d], blocks[d]) > 1]

    if grid_dims:
        grid = tuple(pl.cdiv(sizes[d], blocks[d]) for d in grid_dims)

        def in_map(*gids):
            idx = [0] * 4
            for g, d in zip(gids, grid_dims):
                idx[d] = g
            return tuple(idx)

        def out_map(*gids):
            idx = [0] * 4
            for g, d in zip(gids, grid_dims):
                idx[d] = g
            return tuple(idx[p] for p in perm)
    else:
        grid = (1,)

        def in_map(i):
            return (0,) * 4

        def out_map(i):
            return (0,) * 4

    in_block = tuple(blocks)
    out_block = tuple(blocks[p] for p in perm)
    blk_bytes = math.prod(in_block) * itemsize

    y4 = pl.pallas_call(
        _xpose_kernel,
        out_shape=jax.ShapeDtypeStruct(out4, x.dtype),
        grid=grid,
        in_specs=[pl.BlockSpec(in_block, in_map)],
        out_specs=pl.BlockSpec(out_block, out_map),
        compiler_params=pltpu.CompilerParams(
            dimension_semantics=("parallel",) * len(grid),
            vmem_limit_bytes=_vmem_limit(blk_bytes, vmem_cap),
        ),
    )(x4)
    return y4.reshape(out_shape)


# ----------------------------------------------------------------------------
# Public wrapper
# ----------------------------------------------------------------------------
def pallas_transpose(x: jax.Array, dim0: int, dim1: int) -> jax.Array:
    nd = x.ndim
    if nd < 2:
        return x
    d0, d1 = dim0 % nd, dim1 % nd
    if d0 == d1:
        return x
    d0, d1 = min(d0, d1), max(d0, d1)

    shape = x.shape
    out_shape = list(shape)
    out_shape[d0], out_shape[d1] = out_shape[d1], out_shape[d0]
    out_shape = tuple(out_shape)

    # Swapping a size-1 axis is a pure shape relabel.
    if shape[d0] == 1 or shape[d1] == 1:
        return x.reshape(out_shape)

    L = math.prod(shape[:d0])
    A = shape[d0]
    M = math.prod(shape[d0 + 1:d1])
    B = shape[d1]
    T = math.prod(shape[d1 + 1:])

    itemsize = x.dtype.itemsize
    block_budget, vmem_cap = _tpu_budgets()
    budget_elems = max(128, block_budget // itemsize)
    sub = _sublane_align(itemsize)

    if T > 1:
        return _relabel_copy(x, out_shape, L, A, M, B, T,
                             budget_elems, itemsize, vmem_cap)
    return _lane_transpose(x, out_shape, L, A, M, B,
                           budget_elems, itemsize, sub, vmem_cap)


class Transpose:
    """Pallas mirror of the PyTorch nn.Module `Transpose` (no parameters)."""

    def __init__(self, dim0: int, dim1: int):
        self.dim0 = dim0
        self.dim1 = dim1

    def __call__(self, x: jax.Array) -> jax.Array:
        return pallas_transpose(x, self.dim0, self.dim1)


if __name__ == "__main__":
    key = jax.random.PRNGKey(0)
    # Small NCHW input consistent with the module's typical use.
    x = jax.random.normal(key, (2, 4, 16, 16), dtype=jnp.float32)

    # 1) Swap the spatial axes (H, W): genuine lane transpose (XLU path).
    y_hw = jax.block_until_ready(Transpose(2, 3)(x))
    ref_hw = jnp.swapaxes(x, 2, 3)
    assert y_hw.shape == ref_hw.shape and y_hw.dtype == ref_hw.dtype
    assert bool(jnp.array_equal(y_hw, ref_hw)), "mismatch vs swapaxes(2,3)"

    # 2) Swap batch/channel (N, C): lane-dense pure-relabel copy path
    #    (trailing H*W collapsed into a 256-wide lane dim).
    y_nc = jax.block_until_ready(Transpose(0, 1)(x))
    ref_nc = jnp.swapaxes(x, 0, 1)
    assert y_nc.shape == ref_nc.shape and y_nc.dtype == ref_nc.dtype
    assert bool(jnp.array_equal(y_nc, ref_nc)), "mismatch vs swapaxes(0,1)"

    # 3) Swap channel/height (C, H): sublane swap, also handled as a pure
    #    relabel thanks to the dummy-sublane canonical form.
    y_ch = jax.block_until_ready(Transpose(1, 2)(x))
    ref_ch = jnp.swapaxes(x, 1, 2)
    assert y_ch.shape == ref_ch.shape and y_ch.dtype == ref_ch.dtype
    assert bool(jnp.array_equal(y_ch, ref_ch)), "mismatch vs swapaxes(1,2)"

    print("KERNEL_OK")
</pallas_src>

<mosaic_0001>
module attributes {stable_mosaic.version = 11 : i64} {
  func.func @_xpose_kernel(%arg0: i32, %arg1: memref<8x16x1x16xf32, #tpu.memory_space<vmem>>, %arg2: memref<8x16x1x16xf32, #tpu.memory_space<vmem>>) attributes {dimension_semantics = [#tpu.dimension_semantics<parallel>], iteration_bounds = array<i64: 1>, scalar_prefetch = 0 : i64, scratch_operands = 0 : i64, tpu.core_type = #tpu.core_type<tc>, window_params = [{pipeline_mode = #tpu.pipeline_mode<synchronous>, transform_indices = @transform_0, window_bounds = array<i64: 8, 16, 1, 16>}, {pipeline_mode = #tpu.pipeline_mode<synchronous>, transform_indices = @transform_1, window_bounds = array<i64: 8, 16, 1, 16>}]} {
    %c0 = arith.constant 0 : index
    %c0_0 = arith.constant 0 : index
    %c0_1 = arith.constant 0 : index
    %c0_2 = arith.constant 0 : index
    %0 = vector.load %arg1[%c0, %c0_0, %c0_1, %c0_2] : memref<8x16x1x16xf32, #tpu.memory_space<vmem>>, vector<1x16x1x16xf32>
    %1 = vector.shape_cast %0 : vector<1x16x1x16xf32> to vector<16x16xf32>
    %2 = tpu.transpose %1, [1, 0] : vector<16x16xf32> -> vector<16x16xf32>
    %c0_3 = arith.constant 0 : index
    %c0_4 = arith.constant 0 : index
    %c0_5 = arith.constant 0 : index
    %c0_6 = arith.constant 0 : index
    %3 = vector.load %arg2[%c0_3, %c0_4, %c0_5, %c0_6] : memref<8x16x1x16xf32, #tpu.memory_space<vmem>>, vector<1x16x1x16xf32>
    %4 = vector.shape_cast %3 : vector<1x16x1x16xf32> to vector<16x16xf32>
    %5 = vector.shape_cast %2 : vector<16x16xf32> to vector<1x16x1x16xf32>
    tpu.vector_store %arg2[%c0_3, %c0_4, %c0_5, %c0_6], %5 {strides = array<i32>} : memref<8x16x1x16xf32, #tpu.memory_space<vmem>>, vector<1x16x1x16xf32>,
    %c1 = arith.constant 1 : index
    %c0_7 = arith.constant 0 : index
    %c0_8 = arith.constant 0 : index
    %c0_9 = arith.constant 0 : index
    %6 = vector.load %arg1[%c1, %c0_7, %c0_8, %c0_9] : memref<8x16x1x16xf32, #tpu.memory_space<vmem>>, vector<1x16x1x16xf32>
    %7 = vector.shape_cast %6 : vector<1x16x1x16xf32> to vector<16x16xf32>
    %8 = tpu.transpose %7, [1, 0] : vector<16x16xf32> -> vector<16x16xf32>
    %c1_10 = arith.constant 1 : index
    %c0_11 = arith.constant 0 : index
    %c0_12 = arith.constant 0 : index
    %c0_13 = arith.constant 0 : index
    %9 = vector.load %arg2[%c1_10, %c0_11, %c0_12, %c0_13] : memref<8x16x1x16xf32, #tpu.memory_space<vmem>>, vector<1x16x1x16xf32>
    %10 = vector.shape_cast %9 : vector<1x16x1x16xf32> to vector<16x16xf32>
    %11 = vector.shape_cast %8 : vector<16x16xf32> to vector<1x16x1x16xf32>
    tpu.vector_store %arg2[%c1_10, %c0_11, %c0_12, %c0_13], %11 {strides = array<i32>} : memref<8x16x1x16xf32, #tpu.memory_space<vmem>>, vector<1x16x1x16xf32>,
    %c2 = arith.constant 2 : index
    %c0_14 = arith.constant 0 : index
    %c0_15 = arith.constant 0 : index
    %c0_16 = arith.constant 0 : index
    %12 = vector.load %arg1[%c2, %c0_14, %c0_15, %c0_16] : memref<8x16x1x16xf32, #tpu.memory_space<vmem>>, vector<1x16x1x16xf32>
    %13 = vector.shape_cast %12 : vector<1x16x1x16xf32> to vector<16x16xf32>
    %14 = tpu.transpose %13, [1, 0] : vector<16x16xf32> -> vector<16x16xf32>
    %c2_17 = arith.constant 2 : index
    %c0_18 = arith.constant 0 : index
    %c0_19 = arith.constant 0 : index
    %c0_20 = arith.constant 0 : index
    %15 = vector.load %arg2[%c2_17, %c0_18, %c0_19, %c0_20] : memref<8x16x1x16xf32, #tpu.memory_space<vmem>>, vector<1x16x1x16xf32>
    %16 = vector.shape_cast %15 : vector<1x16x1x16xf32> to vector<16x16xf32>
    %17 = vector.shape_cast %14 : vector<16x16xf32> to vector<1x16x1x16xf32>
    tpu.vector_store %arg2[%c2_17, %c0_18, %c0_19, %c0_20], %17 {strides = array<i32>} : memref<8x16x1x16xf32, #tpu.memory_space<vmem>>, vector<1x16x1x16xf32>,
    %c3 = arith.constant 3 : index
    %c0_21 = arith.constant 0 : index
    %c0_22 = arith.constant 0 : index
    %c0_23 = arith.constant 0 : index
    %18 = vector.load %arg1[%c3, %c0_21, %c0_22, %c0_23] : memref<8x16x1x16xf32, #tpu.memory_space<vmem>>, vector<1x16x1x16xf32>
    %19 = vector.shape_cast %18 : vector<1x16x1x16xf32> to vector<16x16xf32>
    %20 = tpu.transpose %19, [1, 0] : vector<16x16xf32> -> vector<16x16xf32>
    %c3_24 = arith.constant 3 : index
    %c0_25 = arith.constant 0 : index
    %c0_26 = arith.constant 0 : index
    %c0_27 = arith.constant 0 : index
    %21 = vector.load %arg2[%c3_24, %c0_25, %c0_26, %c0_27] : memref<8x16x1x16xf32, #tpu.memory_space<vmem>>, vector<1x16x1x16xf32>
    %22 = vector.shape_cast %21 : vector<1x16x1x16xf32> to vector<16x16xf32>
    %23 = vector.shape_cast %20 : vector<16x16xf32> to vector<1x16x1x16xf32>
    tpu.vector_store %arg2[%c3_24, %c0_25, %c0_26, %c0_27], %23 {strides = array<i32>} : memref<8x16x1x16xf32, #tpu.memory_space<vmem>>, vector<1x16x1x16xf32>,
    %c4 = arith.constant 4 : index
    %c0_28 = arith.constant 0 : index
    %c0_29 = arith.constant 0 : index
    %c0_30 = arith.constant 0 : index
    %24 = vector.load %arg1[%c4, %c0_28, %c0_29, %c0_30] : memref<8x16x1x16xf32, #tpu.memory_space<vmem>>, vector<1x16x1x16xf32>
    %25 = vector.shape_cast %24 : vector<1x16x1x16xf32> to vector<16x16xf32>
    %26 = tpu.transpose %25, [1, 0] : vector<16x16xf32> -> vector<16x16xf32>
    %c4_31 = arith.constant 4 : index
    %c0_32 = arith.constant 0 : index
    %c0_33 = arith.constant 0 : index
    %c0_34 = arith.constant 0 : index
    %27 = vector.load %arg2[%c4_31, %c0_32, %c0_33, %c0_34] : memref<8x16x1x16xf32, #tpu.memory_space<vmem>>, vector<1x16x1x16xf32>
    %28 = vector.shape_cast %27 : vector<1x16x1x16xf32> to vector<16x16xf32>
    %29 = vector.shape_cast %26 : vector<16x16xf32> to vector<1x16x1x16xf32>
    tpu.vector_store %arg2[%c4_31, %c0_32, %c0_33, %c0_34], %29 {strides = array<i32>} : memref<8x16x1x16xf32, #tpu.memory_space<vmem>>, vector<1x16x1x16xf32>,
    %c5 = arith.constant 5 : index
    %c0_35 = arith.constant 0 : index
    %c0_36 = arith.constant 0 : index
    %c0_37 = arith.constant 0 : index
    %30 = vector.load %arg1[%c5, %c0_35, %c0_36, %c0_37] : memref<8x16x1x16xf32, #tpu.memory_space<vmem>>, vector<1x16x1x16xf32>
    %31 = vector.shape_cast %30 : vector<1x16x1x16xf32> to vector<16x16xf32>
    %32 = tpu.transpose %31, [1, 0] : vector<16x16xf32> -> vector<16x16xf32>
    %c5_38 = arith.constant 5 : index
    %c0_39 = arith.constant 0 : index
    %c0_40 = arith.constant 0 : index
    %c0_41 = arith.constant 0 : index
    %33 = vector.load %arg2[%c5_38, %c0_39, %c0_40, %c0_41] : memref<8x16x1x16xf32, #tpu.memory_space<vmem>>, vector<1x16x1x16xf32>
    %34 = vector.shape_cast %33 : vector<1x16x1x16xf32> to vector<16x16xf32>
    %35 = vector.shape_cast %32 : vector<16x16xf32> to vector<1x16x1x16xf32>
    tpu.vector_store %arg2[%c5_38, %c0_39, %c0_40, %c0_41], %35 {strides = array<i32>} : memref<8x16x1x16xf32, #tpu.memory_space<vmem>>, vector<1x16x1x16xf32>,
    %c6 = arith.constant 6 : index
    %c0_42 = arith.constant 0 : index
    %c0_43 = arith.constant 0 : index
    %c0_44 = arith.constant 0 : index
    %36 = vector.load %arg1[%c6, %c0_42, %c0_43, %c0_44] : memref<8x16x1x16xf32, #tpu.memory_space<vmem>>, vector<1x16x1x16xf32>
    %37 = vector.shape_cast %36 : vector<1x16x1x16xf32> to vector<16x16xf32>
    %38 = tpu.transpose %37, [1, 0] : vector<16x16xf32> -> vector<16x16xf32>
    %c6_45 = arith.constant 6 : index
    %c0_46 = arith.constant 0 : index
    %c0_47 = arith.constant 0 : index
    %c0_48 = arith.constant 0 : index
    %39 = vector.load %arg2[%c6_45, %c0_46, %c0_47, %c0_48] : memref<8x16x1x16xf32, #tpu.memory_space<vmem>>, vector<1x16x1x16xf32>
    %40 = vector.shape_cast %39 : vector<1x16x1x16xf32> to vector<16x16xf32>
    %41 = vector.shape_cast %38 : vector<16x16xf32> to vector<1x16x1x16xf32>
    tpu.vector_store %arg2[%c6_45, %c0_46, %c0_47, %c0_48], %41 {strides = array<i32>} : memref<8x16x1x16xf32, #tpu.memory_space<vmem>>, vector<1x16x1x16xf32>,
    %c7 = arith.constant 7 : index
    %c0_49 = arith.constant 0 : index
    %c0_50 = arith.constant 0 : index
    %c0_51 = arith.constant 0 : index
    %42 = vector.load %arg1[%c7, %c0_49, %c0_50, %c0_51] : memref<8x16x1x16xf32, #tpu.memory_space<vmem>>, vector<1x16x1x16xf32>
    %43 = vector.shape_cast %42 : vector<1x16x1x16xf32> to vector<16x16xf32>
    %44 = tpu.transpose %43, [1, 0] : vector<16x16xf32> -> vector<16x16xf32>
    %c7_52 = arith.constant 7 : index
    %c0_53 = arith.constant 0 : index
    %c0_54 = arith.constant 0 : index
    %c0_55 = arith.constant 0 : index
    %45 = vector.load %arg2[%c7_52, %c0_53, %c0_54, %c0_55] : memref<8x16x1x16xf32, #tpu.memory_space<vmem>>, vector<1x16x1x16xf32>
    %46 = vector.shape_cast %45 : vector<1x16x1x16xf32> to vector<16x16xf32>
    %47 = vector.shape_cast %44 : vector<16x16xf32> to vector<1x16x1x16xf32>
    tpu.vector_store %arg2[%c7_52, %c0_53, %c0_54, %c0_55], %47 {strides = array<i32>} : memref<8x16x1x16xf32, #tpu.memory_space<vmem>>, vector<1x16x1x16xf32>,
    return
  }
  func.func @transform_0(%arg0: i32) -> (i32, i32, i32, i32) {
    %c0_i32 = arith.constant 0 : i32
    %c0_i32_0 = arith.constant 0 : i32
    %c0_i32_1 = arith.constant 0 : i32
    %c0_i32_2 = arith.constant 0 : i32
    %c0_i32_3 = arith.constant 0 : i32
    return %c0_i32, %c0_i32_0, %c0_i32_1, %c0_i32_2 : i32, i32, i32, i32
  }
  func.func @transform_1(%arg0: i32) -> (i32, i32, i32, i32) {
    %c0_i32 = arith.constant 0 : i32
    %c0_i32_0 = arith.constant 0 : i32
    %c0_i32_1 = arith.constant 0 : i32
    %c0_i32_2 = arith.constant 0 : i32
    %c0_i32_3 = arith.constant 0 : i32
    return %c0_i32, %c0_i32_0, %c0_i32_1, %c0_i32_2 : i32, i32, i32, i32
  }
}

</mosaic_0001>

<llo_original>
// kernel: tpu_custom_call.1
$region0: #{tpu_custom_call.1}
  #allocation0 [shape = 'u32[]', space=smem, size = 0x4, offset = 0x4, fixed_abs, tag = 'smem constant byte address 0x4 - core index']
  #allocation1 [shape = 'u32[144,128]{1,0:T(1,128)}', space=vmem, size = 0x12000, scoped, tag = 'internal scratch']
  %s0 = inlined_call_operand.hbm [shape: f32[8,16,1,16], index: 0, kind: input, shape index: {}]
  %s1 = inlined_call_operand.hbm [shape: f32[8,16,1,16], index: 1, kind: output, shape index: {}]
  %s2 = sld [smem:[#allocation0]]
  $region18: #{tpu_custom_call.1} parent=0
    _
  %s4 = ssub.s32 1, %s2
  %s5 = scalar_select 0, %s4, %s2
  $region1: #{tpu_custom_call.1} parent=0
    #allocation2 [shape = 'u8[65536]{0}', space=vmem, size = 0x10000, scoped, tag = 'input window, operand 0, single buffered']
    #allocation3 [shape = 's32[1]{0}', space=sflag, size = 0x4, scoped, tag = 'scoped memory for tpu_custom_call.1']
    #allocation4 [shape = 's32[1]{0}', space=sflag, size = 0x4, scoped, tag = 'scoped memory for tpu_custom_call.1']
    #allocation5 [shape = 'u8[65536]{0}', space=vmem, size = 0x10000, scoped, tag = 'output window, operand 0, single buffered']
    %6 = vsyncpa [#allocation3], 0
    %7 = vsyncpa [#allocation4], 0
    // Predicated region
    $region2: #{tpu_custom_call.1} parent=1 // pred_check
      _
    $region3: #{tpu_custom_call.1} parent=1 // pred_check_branch
      %9 = sbr.rel (0) target = $region5
    $region4: #{tpu_custom_call.1} parent=1 // pred_region
      %s11 = ssub.s32 2048, 2048
      %12 = vsyncadd [#allocation3], %s11
      %s13 = sshll.u32 [#allocation2], 4
      %s14 = int_to_ptr.vmem [resolvable:$true] %s13
      %19 = dma.hbm_to_vmem [thread:$0]  %s0, 2048, %s14, [#allocation3], 16, 16, 1
    $region5: #{tpu_custom_call.1} parent=1 // pred_fallthru
      _
    // Predicated region
    $region6: #{tpu_custom_call.1} parent=1 // pred_check
      _
    $region7: #{tpu_custom_call.1} parent=1 // pred_check_branch
      %21 = sbr.rel (0) target = $region9
    $region8: #{tpu_custom_call.1} parent=1 // pred_region
      %22 = dma.done [#allocation3], 2048
    $region9: #{tpu_custom_call.1} parent=1 // pred_fallthru
      _
    %v23 = vld [vmem:[#allocation2] sm:$0x1]
    %v24 = vld [vmem:[#allocation2 + $0x1] sm:$0x1]
    %v25 = vld [vmem:[#allocation2 + $0x2] sm:$0x1]
    %v26 = vld [vmem:[#allocation2 + $0x3] sm:$0x1]
    %v27 = vld [vmem:[#allocation2 + $0x4] sm:$0x1]
    %v28 = vld [vmem:[#allocation2 + $0x5] sm:$0x1]
    %v29 = vld [vmem:[#allocation2 + $0x6] sm:$0x1]
    %v30 = vld [vmem:[#allocation2 + $0x7] sm:$0x1]
    %v31 = vld [vmem:[#allocation2 + $0x8] sm:$0x1]
    %v32 = vld [vmem:[#allocation2 + $0x9] sm:$0x1]
    %v33 = vld [vmem:[#allocation2 + $0xa] sm:$0x1]
    %v34 = vld [vmem:[#allocation2 + $0xb] sm:$0x1]
    %v35 = vld [vmem:[#allocation2 + $0xc] sm:$0x1]
    %v36 = vld [vmem:[#allocation2 + $0xd] sm:$0x1]
    %v37 = vld [vmem:[#allocation2 + $0xe] sm:$0x1]
    %v38 = vld [vmem:[#allocation2 + $0xf] sm:$0x1]
    %v55 = vcombine.low %v23, %v24
    %v56 = vcombine.low %v25, %v26
    %v57 = vcombine.low %v27, %v28
    %v58 = vcombine.low %v29, %v30
    %v60 = vunpack.c.l.s4 1966171168
    %v61 = vunpack.c.0.s8 %v60
    %v62 = vlaneseq
    %v63 = vshrl.u32 %v62, 7
    %v64 = vsub.s32 %v61, %v63
    %v65 = vrot.slane %v55, %v64
    %v67 = vunpack.c.l.s4 1966171168
    %v68 = vunpack.c.0.s8 %v67
    %v69 = vlaneseq
    %v70 = vshrl.u32 %v69, 7
    %v71 = vsub.s32 %v68, %v70
    %v72 = vrot.slane %v56, %v71
    %v74 = vunpack.c.l.s4 1966171168
    %v75 = vunpack.c.0.s8 %v74
    %v76 = vlaneseq
    %v77 = vshrl.u32 %v76, 7
    %v78 = vsub.s32 %v75, %v77
    %v79 = vrot.slane %v57, %v78
    %v81 = vunpack.c.l.s4 1966171168
    %v82 = vunpack.c.0.s8 %v81
    %v83 = vlaneseq
    %v84 = vshrl.u32 %v83, 7
    %v85 = vsub.s32 %v82, %v84
    %v86 = vrot.slane %v58, %v85
    %v87 = vcombine.low %v65, %v72
    %v88 = vcombine.low %v79, %v86
    %v90 = vunpack.c.l.s4 1966171168
    %v91 = vunpack.c.0.s8 %v90
    %v92 = vlaneseq
    %v93 = vshrl.u32 %v92, 7
    %v94 = vsub.s32 %v91, %v93
    %v95 = vrot.slane %v87, %v94
    %v97 = vunpack.c.l.s4 1966171168
    %v98 = vunpack.c.0.s8 %v97
    %v99 = vlaneseq
    %v100 = vshrl.u32 %v99, 7
    %v101 = vsub.s32 %v98, %v100
    %v102 = vrot.slane %v88, %v101
    %v103 = vcombine.low %v95, %v102
    %v104 = vcombine.low %v31, %v32
    %v105 = vcombine.low %v33, %v34
    %v106 = vcombine.low %v35, %v36
    %v107 = vcombine.low %v37, %v38
    %v109 = vunpack.c.l.s4 1966171168
    %v110 = vunpack.c.0.s8 %v109
    %v111 = vlaneseq
    %v112 = vshrl.u32 %v111, 7
    %v113 = vsub.s32 %v110, %v112
    %v114 = vrot.slane %v104, %v113
    %v116 = vunpack.c.l.s4 1966171168
    %v117 = vunpack.c.0.s8 %v116
    %v118 = vlaneseq
    %v119 = vshrl.u32 %v118, 7
    %v120 = vsub.s32 %v117, %v119
    %v121 = vrot.slane %v105, %v120
    %v123 = vunpack.c.l.s4 1966171168
    %v124 = vunpack.c.0.s8 %v123
    %v125 = vlaneseq
    %v126 = vshrl.u32 %v125, 7
    %v127 = vsub.s32 %v124, %v126
    %v128 = vrot.slane %v106, %v127
    %v130 = vunpack.c.l.s4 1966171168
    %v131 = vunpack.c.0.s8 %v130
    %v132 = vlaneseq
    %v133 = vshrl.u32 %v132, 7
    %v134 = vsub.s32 %v131, %v133
    %v135 = vrot.slane %v107, %v134
    %v136 = vcombine.low %v114, %v121
    %v137 = vcombine.low %v128, %v135
    %v139 = vunpack.c.l.s4 1966171168
    %v140 = vunpack.c.0.s8 %v139
    %v141 = vlaneseq
    %v142 = vshrl.u32 %v141, 7
    %v143 = vsub.s32 %v140, %v142
    %v144 = vrot.slane %v136, %v143
    %v146 = vunpack.c.l.s4 1966171168
    %v147 = vunpack.c.0.s8 %v146
    %v148 = vlaneseq
    %v149 = vshrl.u32 %v148, 7
    %v150 = vsub.s32 %v147, %v149
    %v151 = vrot.slane %v137, %v150
    %v152 = vcombine.low %v144, %v151
    %155 = vxpose.xlu0.b32.start [1/16] %v103, 128
    %156 = vxpose.xlu0.b32.cont [2/16] %v152, 128
    %157 = vxpose.xlu0.b32.cont [3/16] 0.0, 128
    %158 = vxpose.xlu0.b32.cont [4/16] 0.0, 128
    %159 = vxpose.xlu0.b32.cont [5/16] 0.0, 128
    %160 = vxpose.xlu0.b32.cont [6/16] 0.0, 128
    %161 = vxpose.xlu0.b32.cont [7/16] 0.0, 128
    %162 = vxpose.xlu0.b32.cont [8/16] 0.0, 128
    %163 = vxpose.xlu0.b32.cont [9/16] 0.0, 128
    %164 = vxpose.xlu0.b32.cont [10/16] 0.0, 128
    %165 = vxpose.xlu0.b32.cont [11/16] 0.0, 128
    %166 = vxpose.xlu0.b32.cont [12/16] 0.0, 128
    %167 = vxpose.xlu0.b32.cont [13/16] 0.0, 128
    %168 = vxpose.xlu0.b32.cont [14/16] 0.0, 128
    %169 = vxpose.xlu0.b32.cont [15/16] 0.0, 128
    %170 = vxpose.xlu0.b32.end [16/16] 0.0, 128
    %v171 = vpop.trf.xlu0
    %v172 = vpop.trf.xlu0
    %v173 = vpop.trf.xlu0
    %v174 = vpop.trf.xlu0
    %v175 = vpop.trf.xlu0
    %v176 = vpop.trf.xlu0
    %v177 = vpop.trf.xlu0
    %v178 = vpop.trf.xlu0
    %v179 = vpop.trf.xlu0
    %v180 = vpop.trf.xlu0
    %v181 = vpop.trf.xlu0
    %v182 = vpop.trf.xlu0
    %v183 = vpop.trf.xlu0
    %v184 = vpop.trf.xlu0
    %v185 = vpop.trf.xlu0
    %v186 = vpop.trf.xlu0
    %v189 = vcombine.high %v171, %v171
    %v191 = vunpack.c.l.s4 1966171168
    %v192 = vunpack.c.0.s8 %v191
    %v193 = vlaneseq
    %v194 = vshrl.u32 %v193, 7
    %v195 = vsub.s32 %v192, %v194
    %v196 = vrot.slane %v171, %v195
    %v198 = vunpack.c.l.s4 1966171168
    %v199 = vunpack.c.0.s8 %v198
    %v200 = vlaneseq
    %v201 = vshrl.u32 %v200, 7
    %v202 = vsub.s32 %v199, %v201
    %v203 = vrot.slane %v189, %v202
    %v204 = vcombine.high %v196, %v196
    %v205 = vcombine.high %v203, %v203
    %v207 = vunpack.c.l.s4 1966171168
    %v208 = vunpack.c.0.s8 %v207
    %v209 = vlaneseq
    %v210 = vshrl.u32 %v209, 7
    %v211 = vsub.s32 %v208, %v210
    %v212 = vrot.slane %v196, %v211
    %v214 = vunpack.c.l.s4 1966171168
    %v215 = vunpack.c.0.s8 %v214
    %v216 = vlaneseq
    %v217 = vshrl.u32 %v216, 7
    %v218 = vsub.s32 %v215, %v217
    %v219 = vrot.slane %v203, %v218
    %v221 = vunpack.c.l.s4 1966171168
    %v222 = vunpack.c.0.s8 %v221
    %v223 = vlaneseq
    %v224 = vshrl.u32 %v223, 7
    %v225 = vsub.s32 %v222, %v224
    %v226 = vrot.slane %v204, %v225
    %v228 = vunpack.c.l.s4 1966171168
    %v229 = vunpack.c.0.s8 %v228
    %v230 = vlaneseq
    %v231 = vshrl.u32 %v230, 7
    %v232 = vsub.s32 %v229, %v231
    %v233 = vrot.slane %v205, %v232
    %v234 = vcombine.high %v212, %v212
    %v235 = vcombine.high %v219, %v219
    %v236 = vcombine.high %v226, %v226
    %v237 = vcombine.high %v233, %v233
    %v238 = vcombine.high %v172, %v172
    %v240 = vunpack.c.l.s4 1966171168
    %v241 = vunpack.c.0.s8 %v240
    %v242 = vlaneseq
    %v243 = vshrl.u32 %v242, 7
    %v244 = vsub.s32 %v241, %v243
    %v245 = vrot.slane %v172, %v244
    %v247 = vunpack.c.l.s4 1966171168
    %v248 = vunpack.c.0.s8 %v247
    %v249 = vlaneseq
    %v250 = vshrl.u32 %v249, 7
    %v251 = vsub.s32 %v248, %v250
    %v252 = vrot.slane %v238, %v251
    %v253 = vcombine.high %v245, %v245
    %v254 = vcombine.high %v252, %v252
    %v256 = vunpack.c.l.s4 1966171168
    %v257 = vunpack.c.0.s8 %v256
    %v258 = vlaneseq
    %v259 = vshrl.u32 %v258, 7
    %v260 = vsub.s32 %v257, %v259
    %v261 = vrot.slane %v245, %v260
    %v263 = vunpack.c.l.s4 1966171168
    %v264 = vunpack.c.0.s8 %v263
    %v265 = vlaneseq
    %v266 = vshrl.u32 %v265, 7
    %v267 = vsub.s32 %v264, %v266
    %v268 = vrot.slane %v252, %v267
    %v270 = vunpack.c.l.s4 1966171168
    %v271 = vunpack.c.0.s8 %v270
    %v272 = vlaneseq
    %v273 = vshrl.u32 %v272, 7
    %v274 = vsub.s32 %v271, %v273
    %v275 = vrot.slane %v253, %v274
    %v277 = vunpack.c.l.s4 1966171168
    %v278 = vunpack.c.0.s8 %v277
    %v279 = vlaneseq
    %v280 = vshrl.u32 %v279, 7
    %v281 = vsub.s32 %v278, %v280
    %v282 = vrot.slane %v254, %v281
    %v283 = vcombine.high %v261, %v261
    %v284 = vcombine.high %v268, %v268
    %v285 = vcombine.high %v275, %v275
    %v286 = vcombine.high %v282, %v282
    %vm303 = vcmask 122880
    %304 = vst.msk [vmem:[#allocation5] sm:$0x1] %vm303, %v212
    %305 = vst.msk [vmem:[#allocation5 + $0x1] sm:$0x1] %vm303, %v226
    %306 = vst.msk [vmem:[#allocation5 + $0x2] sm:$0x1] %vm303, %v234
    %307 = vst.msk [vmem:[#allocation5 + $0x3] sm:$0x1] %vm303, %v236
    %308 = vst.msk [vmem:[#allocation5 + $0x4] sm:$0x1] %vm303, %v219
    %309 = vst.msk [vmem:[#allocation5 + $0x5] sm:$0x1] %vm303, %v233
    %310 = vst.msk [vmem:[#allocation5 + $0x6] sm:$0x1] %vm303, %v235
    %311 = vst.msk [vmem:[#allocation5 + $0x7] sm:$0x1] %vm303, %v237
    %312 = vst.msk [vmem:[#allocation5 + $0x8] sm:$0x1] %vm303, %v261
    %313 = vst.msk [vmem:[#allocation5 + $0x9] sm:$0x1] %vm303, %v275
    %314 = vst.msk [vmem:[#allocation5 + $0xa] sm:$0x1] %vm303, %v283
    %315 = vst.msk [vmem:[#allocation5 + $0xb] sm:$0x1] %vm303, %v285
    %316 = vst.msk [vmem:[#allocation5 + $0xc] sm:$0x1] %vm303, %v268
    %317 = vst.msk [vmem:[#allocation5 + $0xd] sm:$0x1] %vm303, %v282
    %318 = vst.msk [vmem:[#allocation5 + $0xe] sm:$0x1] %vm303, %v284
    %319 = vst.msk [vmem:[#allocation5 + $0xf] sm:$0x1] %vm303, %v286
    %s320 = scalar_lea.vmem [#allocation2], 16
    %v321 = vld [vmem:[%s320] sm:$0x1]
    %v322 = vld [vmem:[%s320 + $0x1] sm:$0x1]
    %v323 = vld [vmem:[%s320 + $0x2] sm:$0x1]
    %v324 = vld [vmem:[%s320 + $0x3] sm:$0x1]
    %v325 = vld [vmem:[%s320 + $0x4] sm:$0x1]
    %v326 = vld [vmem:[%s320 + $0x5] sm:$0x1]
    %v327 = vld [vmem:[%s320 + $0x6] sm:$0x1]
    %v328 = vld [vmem:[%s320 + $0x7] sm:$0x1]
    %v329 = vld [vmem:[%s320 + $0x8] sm:$0x1]
    %v330 = vld [vmem:[%s320 + $0x9] sm:$0x1]
    %v331 = vld [vmem:[%s320 + $0xa] sm:$0x1]
    %v332 = vld [vmem:[%s320 + $0xb] sm:$0x1]
    %v333 = vld [vmem:[%s320 + $0xc] sm:$0x1]
    %v334 = vld [vmem:[%s320 + $0xd] sm:$0x1]
    %v335 = vld [vmem:[%s320 + $0xe] sm:$0x1]
    %v336 = vld [vmem:[%s320 + $0xf] sm:$0x1]
    %v353 = vcombine.low %v321, %v322
    %v354 = vcombine.low %v323, %v324
    %v355 = vcombine.low %v325, %v326
    %v356 = vcombine.low %v327, %v328
    %v358 = vunpack.c.l.s4 1966171168
    %v359 = vunpack.c.0.s8 %v358
    %v360 = vlaneseq
    %v361 = vshrl.u32 %v360, 7
    %v362 = vsub.s32 %v359, %v361
    %v363 = vrot.slane %v353, %v362
    %v365 = vunpack.c.l.s4 1966171168
    %v366 = vunpack.c.0.s8 %v365
    %v367 = vlaneseq
    %v368 = vshrl.u32 %v367, 7
    %v369 = vsub.s32 %v366, %v368
    %v370 = vrot.slane %v354, %v369
    %v372 = vunpack.c.l.s4 1966171168
    %v373 = vunpack.c.0.s8 %v372
    %v374 = vlaneseq
    %v375 = vshrl.u32 %v374, 7
    %v376 = vsub.s32 %v373, %v375
    %v377 = vrot.slane %v355, %v376
    %v379 = vunpack.c.l.s4 1966171168
    %v380 = vunpack.c.0.s8 %v379
    %v381 = vlaneseq
    %v382 = vshrl.u32 %v381, 7
    %v383 = vsub.s32 %v380, %v382
    %v384 = vrot.slane %v356, %v383
    %v385 = vcombine.low %v363, %v370
    %v386 = vcombine.low %v377, %v384
    %v388 = vunpack.c.l.s4 1966171168
    %v389 = vunpack.c.0.s8 %v388
    %v390 = vlaneseq
    %v391 = vshrl.u32 %v390, 7
    %v392 = vsub.s32 %v389, %v391
    %v393 = vrot.slane %v385, %v392
    %v395 = vunpack.c.l.s4 1966171168
    %v396 = vunpack.c.0.s8 %v395
    %v397 = vlaneseq
    %v398 = vshrl.u32 %v397, 7
    %v399 = vsub.s32 %v396, %v398
    %v400 = vrot.slane %v386, %v399
    %v401 = vcombine.low %v393, %v400
    %v402 = vcombine.low %v329, %v330
    %v403 = vcombine.low %v331, %v332
    %v404 = vcombine.low %v333, %v334
    %v405 = vcombine.low %v335, %v336
    %v407 = vunpack.c.l.s4 1966171168
    %v408 = vunpack.c.0.s8 %v407
    %v409 = vlaneseq
    %v410 = vshrl.u32 %v409, 7
    %v411 = vsub.s32 %v408, %v410
    %v412 = vrot.slane %v402, %v411
    %v414 = vunpack.c.l.s4 1966171168
    %v415 = vunpack.c.0.s8 %v414
    %v416 = vlaneseq
    %v417 = vshrl.u32 %v416, 7
    %v418 = vsub.s32 %v415, %v417
    %v419 = vrot.slane %v403, %v418
    %v421 = vunpack.c.l.s4 1966171168
    %v422 = vunpack.c.0.s8 %v421
    %v423 = vlaneseq
    %v424 = vshrl.u32 %v423, 7
    %v425 = vsub.s32 %v422, %v424
    %v426 = vrot.slane %v404, %v425
    %v428 = vunpack.c.l.s4 1966171168
    %v429 = vunpack.c.0.s8 %v428
    %v430 = vlaneseq
    %v431 = vshrl.u32 %v430, 7
    %v432 = vsub.s32 %v429, %v431
    %v433 = vrot.slane %v405, %v432
    %v434 = vcombine.low %v412, %v419
    %v435 = vcombine.low %v426, %v433
    %v437 = vunpack.c.l.s4 1966171168
    %v438 = vunpack.c.0.s8 %v437
    %v439 = vlaneseq
    %v440 = vshrl.u32 %v439, 7
    %v441 = vsub.s32 %v438, %v440
    %v442 = vrot.slane %v434, %v441
    %v444 = vunpack.c.l.s4 1966171168
    %v445 = vunpack.c.0.s8 %v444
    %v446 = vlaneseq
    %v447 = vshrl.u32 %v446, 7
    %v448 = vsub.s32 %v445, %v447
    %v449 = vrot.slane %v435, %v448
    %v450 = vcombine.low %v442, %v449
    %453 = vxpose.xlu0.b32.start [1/16] %v401, 128
    %454 = vxpose.xlu0.b32.cont [2/16] %v450, 128
    %455 = vxpose.xlu0.b32.cont [3/16] 0.0, 128
    %456 = vxpose.xlu0.b32.cont [4/16] 0.0, 128
    %457 = vxpose.xlu0.b32.cont [5/16] 0.0, 128
    %458 = vxpose.xlu0.b32.cont [6/16] 0.0, 128
    %459 = vxpose.xlu0.b32.cont [7/16] 0.0, 128
    %460 = vxpose.xlu0.b32.cont [8/16] 0.0, 128
    %461 = vxpose.xlu0.b32.cont [9/16] 0.0, 128
    %462 = vxpose.xlu0.b32.cont [10/16] 0.0, 128
    %463 = vxpose.xlu0.b32.cont [11/16] 0.0, 128
    %464 = vxpose.xlu0.b32.cont [12/16] 0.0, 128
    %465 = vxpose.xlu0.b32.cont [13/16] 0.0, 128
    %466 = vxpose.xlu0.b32.cont [14/16] 0.0, 128
    %467 = vxpose.xlu0.b32.cont [15/16] 0.0, 128
    %468 = vxpose.xlu0.b32.end [16/16] 0.0, 128
    %v469 = vpop.trf.xlu0
    %v470 = vpop.trf.xlu0
    %v471 = vpop.trf.xlu0
    %v472 = vpop.trf.xlu0
    %v473 = vpop.trf.xlu0
    %v474 = vpop.trf.xlu0
    %v475 = vpop.trf.xlu0
    %v476 = vpop.trf.xlu0
    %v477 = vpop.trf.xlu0
    %v478 = vpop.trf.xlu0
    %v479 = vpop.trf.xlu0
    %v480 = vpop.trf.xlu0
    %v481 = vpop.trf.xlu0
    %v482 = vpop.trf.xlu0
    %v483 = vpop.trf.xlu0
    %v484 = vpop.trf.xlu0
    %v487 = vcombine.high %v469, %v469
    %v489 = vunpack.c.l.s4 1966171168
    %v490 = vunpack.c.0.s8 %v489
    %v491 = vlaneseq
    %v492 = vshrl.u32 %v491, 7
    %v493 = vsub.s32 %v490, %v492
    %v494 = vrot.slane %v469, %v493
    %v496 = vunpack.c.l.s4 1966171168
    %v497 = vunpack.c.0.s8 %v496
    %v498 = vlaneseq
    %v499 = vshrl.u32 %v498, 7
    %v500 = vsub.s32 %v497, %v499
    %v501 = vrot.slane %v487, %v500
    %v502 = vcombine.high %v494, %v494
    %v503 = vcombine.high %v501, %v501
    %v505 = vunpack.c.l.s4 1966171168
    %v506 = vunpack.c.0.s8 %v505
    %v507 = vlaneseq
    %v508 = vshrl.u32 %v507, 7
    %v509 = vsub.s32 %v506, %v508
    %v510 = vrot.slane %v494, %v509
    %v512 = vunpack.c.l.s4 1966171168
    %v513 = vunpack.c.0.s8 %v512
    %v514 = vlaneseq
    %v515 = vshrl.u32 %v514, 7
    %v516 = vsub.s32 %v513, %v515
    %v517 = vrot.slane %v501, %v516
    %v519 = vunpack.c.l.s4 1966171168
    %v520 = vunpack.c.0.s8 %v519
    %v521 = vlaneseq
    %v522 = vshrl.u32 %v521, 7
    %v523 = vsub.s32 %v520, %v522
    %v524 = vrot.slane %v502, %v523
    %v526 = vunpack.c.l.s4 1966171168
    %v527 = vunpack.c.0.s8 %v526
    %v528 = vlaneseq
    %v529 = vshrl.u32 %v528, 7
    %v530 = vsub.s32 %v527, %v529
    %v531 = vrot.slane %v503, %v530
    %v532 = vcombine.high %v510, %v510
    %v533 = vcombine.high %v517, %v517
    %v534 = vcombine.high %v524, %v524
    %v535 = vcombine.high %v531, %v531
    %v536 = vcombine.high %v470, %v470
    %v538 = vunpack.c.l.s4 1966171168
    %v539 = vunpack.c.0.s8 %v538
    %v540 = vlaneseq
    %v541 = vshrl.u32 %v540, 7
    %v542 = vsub.s32 %v539, %v541
    %v543 = vrot.slane %v470, %v542
    %v545 = vunpack.c.l.s4 1966171168
    %v546 = vunpack.c.0.s8 %v545
    %v547 = vlaneseq
    %v548 = vshrl.u32 %v547, 7
    %v549 = vsub.s32 %v546, %v548
    %v550 = vrot.slane %v536, %v549
    %v551 = vcombine.high %v543, %v543
    %v552 = vcombine.high %v550, %v550
    %v554 = vunpack.c.l.s4 1966171168
    %v555 = vunpack.c.0.s8 %v554
    %v556 = vlaneseq
    %v557 = vshrl.u32 %v556, 7
    %v558 = vsub.s32 %v555, %v557
    %v559 = vrot.slane %v543, %v558
    %v561 = vunpack.c.l.s4 1966171168
    %v562 = vunpack.c.0.s8 %v561
    %v563 = vlaneseq
    %v564 = vshrl.u32 %v563, 7
    %v565 = vsub.s32 %v562, %v564
    %v566 = vrot.slane %v550, %v565
    %v568 = vunpack.c.l.s4 1966171168
    %v569 = vunpack.c.0.s8 %v568
    %v570 = vlaneseq
    %v571 = vshrl.u32 %v570, 7
    %v572 = vsub.s32 %v569, %v571
    %v573 = vrot.slane %v551, %v572
    %v575 = vunpack.c.l.s4 1966171168
    %v576 = vunpack.c.0.s8 %v575
    %v577 = vlaneseq
    %v578 = vshrl.u32 %v577, 7
    %v579 = vsub.s32 %v576, %v578
    %v580 = vrot.slane %v552, %v579
    %v581 = vcombine.high %v559, %v559
    %v582 = vcombine.high %v566, %v566
    %v583 = vcombine.high %v573, %v573
    %v584 = vcombine.high %v580, %v580
    %s601 = scalar_lea.vmem [#allocation5], 16
    %602 = vst.msk [vmem:[%s601] sm:$0x1] %vm303, %v510
    %603 = vst.msk [vmem:[%s601 + $0x1] sm:$0x1] %vm303, %v524
    %604 = vst.msk [vmem:[%s601 + $0x2] sm:$0x1] %vm303, %v532
    %605 = vst.msk [vmem:[%s601 + $0x3] sm:$0x1] %vm303, %v534
    %606 = vst.msk [vmem:[%s601 + $0x4] sm:$0x1] %vm303, %v517
    %607 = vst.msk [vmem:[%s601 + $0x5] sm:$0x1] %vm303, %v531
    %608 = vst.msk [vmem:[%s601 + $0x6] sm:$0x1] %vm303, %v533
    %609 = vst.msk [vmem:[%s601 + $0x7] sm:$0x1] %vm303, %v535
    %610 = vst.msk [vmem:[%s601 + $0x8] sm:$0x1] %vm303, %v559
    %611 = vst.msk [vmem:[%s601 + $0x9] sm:$0x1] %vm303, %v573
    %612 = vst.msk [vmem:[%s601 + $0xa] sm:$0x1] %vm303, %v581
    %613 = vst.msk [vmem:[%s601 + $0xb] sm:$0x1] %vm303, %v583
    %614 = vst.msk [vmem:[%s601 + $0xc] sm:$0x1] %vm303, %v566
    %615 = vst.msk [vmem:[%s601 + $0xd] sm:$0x1] %vm303, %v580
    %616 = vst.msk [vmem:[%s601 + $0xe] sm:$0x1] %vm303, %v582
    %617 = vst.msk [vmem:[%s601 + $0xf] sm:$0x1] %vm303, %v584
    %s618 = scalar_lea.vmem [#allocation2], 32
    %v619 = vld [vmem:[%s618] sm:$0x1]
    %v620 = vld [vmem:[%s618 + $0x1] sm:$0x1]
    %v621 = vld [vmem:[%s618 + $0x2] sm:$0x1]
    %v622 = vld [vmem:[%s618 + $0x3] sm:$0x1]
    %v623 = vld [vmem:[%s618 + $0x4] sm:$0x1]
    %v624 = vld [vmem:[%s618 + $0x5] sm:$0x1]
    %v625 = vld [vmem:[%s618 + $0x6] sm:$0x1]
    %v626 = vld [vmem:[%s618 + $0x7] sm:$0x1]
    %v627 = vld [vmem:[%s618 + $0x8] sm:$0x1]
    %v628 = vld [vmem:[%s618 + $0x9] sm:$0x1]
    %v629 = vld [vmem:[%s618 + $0xa] sm:$0x1]
    %v630 = vld [vmem:[%s618 + $0xb] sm:$0x1]
    %v631 = vld [vmem:[%s618 + $0xc] sm:$0x1]
    %v632 = vld [vmem:[%s618 + $0xd] sm:$0x1]
    %v633 = vld [vmem:[%s618 + $0xe] sm:$0x1]
    %v634 = vld [vmem:[%s618 + $0xf] sm:$0x1]
    %v651 = vcombine.low %v619, %v620
    %v652 = vcombine.low %v621, %v622
    %v653 = vcombine.low %v623, %v624
    %v654 = vcombine.low %v625, %v626
    %v656 = vunpack.c.l.s4 1966171168
    %v657 = vunpack.c.0.s8 %v656
    %v658 = vlaneseq
    %v659 = vshrl.u32 %v658, 7
    %v660 = vsub.s32 %v657, %v659
    %v661 = vrot.slane %v651, %v660
    %v663 = vunpack.c.l.s4 1966171168
    %v664 = vunpack.c.0.s8 %v663
    %v665 = vlaneseq
    %v666 = vshrl.u32 %v665, 7
    %v667 = vsub.s32 %v664, %v666
    %v668 = vrot.slane %v652, %v667
    %v670 = vunpack.c.l.s4 1966171168
    %v671 = vunpack.c.0.s8 %v670
    %v672 = vlaneseq
    %v673 = vshrl.u32 %v672, 7
    %v674 = vsub.s32 %v671, %v673
    %v675 = vrot.slane %v653, %v674
    %v677 = vunpack.c.l.s4 1966171168
    %v678 = vunpack.c.0.s8 %v677
    %v679 = vlaneseq
    %v680 = vshrl.u32 %v679, 7
    %v681 = vsub.s32 %v678, %v680
    %v682 = vrot.slane %v654, %v681
    %v683 = vcombine.low %v661, %v668
    %v684 = vcombine.low %v675, %v682
    %v686 = vunpack.c.l.s4 1966171168
    %v687 = vunpack.c.0.s8 %v686
    %v688 = vlaneseq
    %v689 = vshrl.u32 %v688, 7
    %v690 = vsub.s32 %v687, %v689
    %v691 = vrot.slane %v683, %v690
    %v693 = vunpack.c.l.s4 1966171168
    %v694 = vunpack.c.0.s8 %v693
    %v695 = vlaneseq
    %v696 = vshrl.u32 %v695, 7
    %v697 = vsub.s32 %v694, %v696
    %v698 = vrot.slane %v684, %v697
    %v699 = vcombine.low %v691, %v698
    %v700 = vcombine.low %v627, %v628
    %v701 = vcombine.low %v629, %v630
    %v702 = vcombine.low %v631, %v632
    %v703 = vcombine.low %v633, %v634
    %v705 = vunpack.c.l.s4 1966171168
    %v706 = vunpack.c.0.s8 %v705
    %v707 = vlaneseq
    %v708 = vshrl.u32 %v707, 7
    %v709 = vsub.s32 %v706, %v708
    %v710 = vrot.slane %v700, %v709
    %v712 = vunpack.c.l.s4 1966171168
    %v713 = vunpack.c.0.s8 %v712
    %v714 = vlaneseq
    %v715 = vshrl.u32 %v714, 7
    %v716 = vsub.s32 %v713, %v715
    %v717 = vrot.slane %v701, %v716
    %v719 = vunpack.c.l.s4 1966171168
    %v720 = vunpack.c.0.s8 %v719
    %v721 = vlaneseq
    %v722 = vshrl.u32 %v721, 7
    %v723 = vsub.s32 %v720, %v722
    %v724 = vrot.slane %v702, %v723
    %v726 = vunpack.c.l.s4 1966171168
    %v727 = vunpack.c.0.s8 %v726
    %v728 = vlaneseq
    %v729 = vshrl.u32 %v728, 7
    %v730 = vsub.s32 %v727, %v729
    %v731 = vrot.slane %v703, %v730
    %v732 = vcombine.low %v710, %v717
    %v733 = vcombine.low %v724, %v731
    %v735 = vunpack.c.l.s4 1966171168
    %v736 = vunpack.c.0.s8 %v735
    %v737 = vlaneseq
    %v738 = vshrl.u32 %v737, 7
    %v739 = vsub.s32 %v736, %v738
    %v740 = vrot.slane %v732, %v739
    %v742 = vunpack.c.l.s4 1966171168
    %v743 = vunpack.c.0.s8 %v742
    %v744 = vlaneseq
    %v745 = vshrl.u32 %v744, 7
    %v746 = vsub.s32 %v743, %v745
    %v747 = vrot.slane %v733, %v746
    %v748 = vcombine.low %v740, %v747
    %751 = vxpose.xlu0.b32.start [1/16] %v699, 128
    %752 = vxpose.xlu0.b32.cont [2/16] %v748, 128
    %753 = vxpose.xlu0.b32.cont [3/16] 0.0, 128
    %754 = vxpose.xlu0.b32.cont [4/16] 0.0, 128
    %755 = vxpose.xlu0.b32.cont [5/16] 0.0, 128
    %756 = vxpose.xlu0.b32.cont [6/16] 0.0, 128
    %757 = vxpose.xlu0.b32.cont [7/16] 0.0, 128
    %758 = vxpose.xlu0.b32.cont [8/16] 0.0, 128
    %759 = vxpose.xlu0.b32.cont [9/16] 0.0, 128
    %760 = vxpose.xlu0.b32.cont [10/16] 0.0, 128
    %761 = vxpose.xlu0.b32.cont [11/16] 0.0, 128
    %762 = vxpose.xlu0.b32.cont [12/16] 0.0, 128
    %763 = vxpose.xlu0.b32.cont [13/16] 0.0, 128
    %764 = vxpose.xlu0.b32.cont [14/16] 0.0, 128
    %765 = vxpose.xlu0.b32.cont [15/16] 0.0, 128
    %766 = vxpose.xlu0.b32.end [16/16] 0.0, 128
    %v767 = vpop.trf.xlu0
    %v768 = vpop.trf.xlu0
    %v769 = vpop.trf.xlu0
    %v770 = vpop.trf.xlu0
    %v771 = vpop.trf.xlu0
    %v772 = vpop.trf.xlu0
    %v773 = vpop.trf.xlu0
    %v774 = vpop.trf.xlu0
    %v775 = vpop.trf.xlu0
    %v776 = vpop.trf.xlu0
    %v777 = vpop.trf.xlu0
    %v778 = vpop.trf.xlu0
    %v779 = vpop.trf.xlu0
    %v780 = vpop.trf.xlu0
    %v781 = vpop.trf.xlu0
    %v782 = vpop.trf.xlu0
    %v785 = vcombine.high %v767, %v767
    %v787 = vunpack.c.l.s4 1966171168
    %v788 = vunpack.c.0.s8 %v787
    %v789 = vlaneseq
    %v790 = vshrl.u32 %v789, 7
    %v791 = vsub.s32 %v788, %v790
    %v792 = vrot.slane %v767, %v791
    %v794 = vunpack.c.l.s4 1966171168
    %v795 = vunpack.c.0.s8 %v794
    %v796 = vlaneseq
    %v797 = vshrl.u32 %v796, 7
    %v798 = vsub.s32 %v795, %v797
    %v799 = vrot.slane %v785, %v798
    %v800 = vcombine.high %v792, %v792
    %v801 = vcombine.high %v799, %v799
    %v803 = vunpack.c.l.s4 1966171168
    %v804 = vunpack.c.0.s8 %v803
    %v805 = vlaneseq
    %v806 = vshrl.u32 %v805, 7
    %v807 = vsub.s32 %v804, %v806
    %v808 = vrot.slane %v792, %v807
    %v810 = vunpack.c.l.s4 1966171168
    %v811 = vunpack.c.0.s8 %v810
    %v812 = vlaneseq
    %v813 = vshrl.u32 %v812, 7
    %v814 = vsub.s32 %v811, %v813
    %v815 = vrot.slane %v799, %v814
    %v817 = vunpack.c.l.s4 1966171168
    %v818 = vunpack.c.0.s8 %v817
    %v819 = vlaneseq
    %v820 = vshrl.u32 %v819, 7
    %v821 = vsub.s32 %v818, %v820
    %v822 = vrot.slane %v800, %v821
    %v824 = vunpack.c.l.s4 1966171168
    %v825 = vunpack.c.0.s8 %v824
    %v826 = vlaneseq
    %v827 = vshrl.u32 %v826, 7
    %v828 = vsub.s32 %v825, %v827
    %v829 = vrot.slane %v801, %v828
    %v830 = vcombine.high %v808, %v808
    %v831 = vcombine.high %v815, %v815
    %v832 = vcombine.high %v822, %v822
    %v833 = vcombine.high %v829, %v829
    %v834 = vcombine.high %v768, %v768
    %v836 = vunpack.c.l.s4 1966171168
    %v837 = vunpack.c.0.s8 %v836
    %v838 = vlaneseq
    %v839 = vshrl.u32 %v838, 7
    %v840 = vsub.s32 %v837, %v839
    %v841 = vrot.slane %v768, %v840
    %v843 = vunpack.c.l.s4 1966171168
    %v844 = vunpack.c.0.s8 %v843
    %v845 = vlaneseq
    %v846 = vshrl.u32 %v845, 7
    %v847 = vsub.s32 %v844, %v846
    %v848 = vrot.slane %v834, %v847
    %v849 = vcombine.high %v841, %v841
    %v850 = vcombine.high %v848, %v848
    %v852 = vunpack.c.l.s4 1966171168
    %v853 = vunpack.c.0.s8 %v852
    %v854 = vlaneseq
    %v855 = vshrl.u32 %v854, 7
    %v856 = vsub.s32 %v853, %v855
    %v857 = vrot.slane %v841, %v856
    %v859 = vunpack.c.l.s4 1966171168
    %v860 = vunpack.c.0.s8 %v859
    %v861 = vlaneseq
    %v862 = vshrl.u32 %v861, 7
    %v863 = vsub.s32 %v860, %v862
    %v864 = vrot.slane %v848, %v863
    %v866 = vunpack.c.l.s4 1966171168
    %v867 = vunpack.c.0.s8 %v866
    %v868 = vlaneseq
    %v869 = vshrl.u32 %v868, 7
    %v870 = vsub.s32 %v867, %v869
    %v871 = vrot.slane %v849, %v870
    %v873 = vunpack.c.l.s4 1966171168
    %v874 = vunpack.c.0.s8 %v873
    %v875 = vlaneseq
    %v876 = vshrl.u32 %v875, 7
    %v877 = vsub.s32 %v874, %v876
    %v878 = vrot.slane %v850, %v877
    %v879 = vcombine.high %v857, %v857
    %v880 = vcombine.high %v864, %v864
    %v881 = vcombine.high %v871, %v871
    %v882 = vcombine.high %v878, %v878
    %s899 = scalar_lea.vmem [#allocation5], 32
    %900 = vst.msk [vmem:[%s899] sm:$0x1] %vm303, %v808
    %901 = vst.msk [vmem:[%s899 + $0x1] sm:$0x1] %vm303, %v822
    %902 = vst.msk [vmem:[%s899 + $0x2] sm:$0x1] %vm303, %v830
    %903 = vst.msk [vmem:[%s899 + $0x3] sm:$0x1] %vm303, %v832
    %904 = vst.msk [vmem:[%s899 + $0x4] sm:$0x1] %vm303, %v815
    %905 = vst.msk [vmem:[%s899 + $0x5] sm:$0x1] %vm303, %v829
    %906 = vst.msk [vmem:[%s899 + $0x6] sm:$0x1] %vm303, %v831
    %907 = vst.msk [vmem:[%s899 + $0x7] sm:$0x1] %vm303, %v833
    %908 = vst.msk [vmem:[%s899 + $0x8] sm:$0x1] %vm303, %v857
    %909 = vst.msk [vmem:[%s899 + $0x9] sm:$0x1] %vm303, %v871
    %910 = vst.msk [vmem:[%s899 + $0xa] sm:$0x1] %vm303, %v879
    %911 = vst.msk [vmem:[%s899 + $0xb] sm:$0x1] %vm303, %v881
    %912 = vst.msk [vmem:[%s899 + $0xc] sm:$0x1] %vm303, %v864
    %913 = vst.msk [vmem:[%s899 + $0xd] sm:$0x1] %vm303, %v878
    %914 = vst.msk [vmem:[%s899 + $0xe] sm:$0x1] %vm303, %v880
    %915 = vst.msk [vmem:[%s899 + $0xf] sm:$0x1] %vm303, %v882
    %s916 = scalar_lea.vmem [#allocation2], 48
    %v917 = vld [vmem:[%s916] sm:$0x1]
    %v918 = vld [vmem:[%s916 + $0x1] sm:$0x1]
    %v919 = vld [vmem:[%s916 + $0x2] sm:$0x1]
    %v920 = vld [vmem:[%s916 + $0x3] sm:$0x1]
    %v921 = vld [vmem:[%s916 + $0x4] sm:$0x1]
    %v922 = vld [vmem:[%s916 + $0x5] sm:$0x1]
    %v923 = vld [vmem:[%s916 + $0x6] sm:$0x1]
    %v924 = vld [vmem:[%s916 + $0x7] sm:$0x1]
    %v925 = vld [vmem:[%s916 + $0x8] sm:$0x1]
    %v926 = vld [vmem:[%s916 + $0x9] sm:$0x1]
    %v927 = vld [vmem:[%s916 + $0xa] sm:$0x1]
    %v928 = vld [vmem:[%s916 + $0xb] sm:$0x1]
    %v929 = vld [vmem:[%s916 + $0xc] sm:$0x1]
    %v930 = vld [vmem:[%s916 + $0xd] sm:$0x1]
    %v931 = vld [vmem:[%s916 + $0xe] sm:$0x1]
    %v932 = vld [vmem:[%s916 + $0xf] sm:$0x1]
    %v949 = vcombine.low %v917, %v918
    %v950 = vcombine.low %v919, %v920
    %v951 = vcombine.low %v921, %v922
    %v952 = vcombine.low %v923, %v924
    %v954 = vunpack.c.l.s4 1966171168
    %v955 = vunpack.c.0.s8 %v954
    %v956 = vlaneseq
    %v957 = vshrl.u32 %v956, 7
    %v958 = vsub.s32 %v955, %v957
    %v959 = vrot.slane %v949, %v958
    %v961 = vunpack.c.l.s4 1966171168
    %v962 = vunpack.c.0.s8 %v961
    %v963 = vlaneseq
    %v964 = vshrl.u32 %v963, 7
    %v965 = vsub.s32 %v962, %v964
    %v966 = vrot.slane %v950, %v965
    %v968 = vunpack.c.l.s4 1966171168
    %v969 = vunpack.c.0.s8 %v968
    %v970 = vlaneseq
    %v971 = vshrl.u32 %v970, 7
    %v972 = vsub.s32 %v969, %v971
    %v973 = vrot.slane %v951, %v972
    %v975 = vunpack.c.l.s4 1966171168
    %v976 = vunpack.c.0.s8 %v975
    %v977 = vlaneseq
    %v978 = vshrl.u32 %v977, 7
    %v979 = vsub.s32 %v976, %v978
    %v980 = vrot.slane %v952, %v979
    %v981 = vcombine.low %v959, %v966
    %v982 = vcombine.low %v973, %v980
    %v984 = vunpack.c.l.s4 1966171168
    %v985 = vunpack.c.0.s8 %v984
    %v986 = vlaneseq
    %v987 = vshrl.u32 %v986, 7
    %v988 = vsub.s32 %v985, %v987
    %v989 = vrot.slane %v981, %v988
    %v991 = vunpack.c.l.s4 1966171168
    %v992 = vunpack.c.0.s8 %v991
    %v993 = vlaneseq
    %v994 = vshrl.u32 %v993, 7
    %v995 = vsub.s32 %v992, %v994
    %v996 = vrot.slane %v982, %v995
    %v997 = vcombine.low %v989, %v996
    %v998 = vcombine.low %v925, %v926
    %v999 = vcombine.low %v927, %v928
    %v1000 = vcombine.low %v929, %v930
    %v1001 = vcombine.low %v931, %v932
    %v1003 = vunpack.c.l.s4 1966171168
    %v1004 = vunpack.c.0.s8 %v1003
    %v1005 = vlaneseq
    %v1006 = vshrl.u32 %v1005, 7
    %v1007 = vsub.s32 %v1004, %v1006
    %v1008 = vrot.slane %v998, %v1007
    %v1010 = vunpack.c.l.s4 1966171168
    %v1011 = vunpack.c.0.s8 %v1010
    %v1012 = vlaneseq
    %v1013 = vshrl.u32 %v1012, 7
    %v1014 = vsub.s32 %v1011, %v1013
    %v1015 = vrot.slane %v999, %v1014
    %v1017 = vunpack.c.l.s4 1966171168
    %v1018 = vunpack.c.0.s8 %v1017
    %v1019 = vlaneseq
    %v1020 = vshrl.u32 %v1019, 7
    %v1021 = vsub.s32 %v1018, %v1020
    %v1022 = vrot.slane %v1000, %v1021
    %v1024 = vunpack.c.l.s4 1966171168
    %v1025 = vunpack.c.0.s8 %v1024
    %v1026 = vlaneseq
    %v1027 = vshrl.u32 %v1026, 7
    %v1028 = vsub.s32 %v1025, %v1027
    %v1029 = vrot.slane %v1001, %v1028
    %v1030 = vcombine.low %v1008, %v1015
    %v1031 = vcombine.low %v1022, %v1029
    %v1033 = vunpack.c.l.s4 1966171168
    %v1034 = vunpack.c.0.s8 %v1033
    %v1035 = vlaneseq
    %v1036 = vshrl.u32 %v1035, 7
    %v1037 = vsub.s32 %v1034, %v1036
    %v1038 = vrot.slane %v1030, %v1037
    %v1040 = vunpack.c.l.s4 1966171168
    %v1041 = vunpack.c.0.s8 %v1040
    %v1042 = vlaneseq
    %v1043 = vshrl.u32 %v1042, 7
    %v1044 = vsub.s32 %v1041, %v1043
    %v1045 = vrot.slane %v1031, %v1044
    %v1046 = vcombine.low %v1038, %v1045
    %1049 = vxpose.xlu0.b32.start [1/16] %v997, 128
    %1050 = vxpose.xlu0.b32.cont [2/16] %v1046, 128
    %1051 = vxpose.xlu0.b32.cont [3/16] 0.0, 128
    %1052 = vxpose.xlu0.b32.cont [4/16] 0.0, 128
    %1053 = vxpose.xlu0.b32.cont [5/16] 0.0, 128
    %1054 = vxpose.xlu0.b32.cont [6/16] 0.0, 128
    %1055 = vxpose.xlu0.b32.cont [7/16] 0.0, 128
    %1056 = vxpose.xlu0.b32.cont [8/16] 0.0, 128
    %1057 = vxpose.xlu0.b32.cont [9/16] 0.0, 128
    %1058 = vxpose.xlu0.b32.cont [10/16] 0.0, 128
    %1059 = vxpose.xlu0.b32.cont [11/16] 0.0, 128
    %1060 = vxpose.xlu0.b32.cont [12/16] 0.0, 128
    %1061 = vxpose.xlu0.b32.cont [13/16] 0.0, 128
    %1062 = vxpose.xlu0.b32.cont [14/16] 0.0, 128
    %1063 = vxpose.xlu0.b32.cont [15/16] 0.0, 128
    %1064 = vxpose.xlu0.b32.end [16/16] 0.0, 128
    %v1065 = vpop.trf.xlu0
    %v1066 = vpop.trf.xlu0
    %v1067 = vpop.trf.xlu0
    %v1068 = vpop.trf.xlu0
    %v1069 = vpop.trf.xlu0
    %v1070 = vpop.trf.xlu0
    %v1071 = vpop.trf.xlu0
    %v1072 = vpop.trf.xlu0
    %v1073 = vpop.trf.xlu0
    %v1074 = vpop.trf.xlu0
    %v1075 = vpop.trf.xlu0
    %v1076 = vpop.trf.xlu0
    %v1077 = vpop.trf.xlu0
    %v1078 = vpop.trf.xlu0
    %v1079 = vpop.trf.xlu0
    %v1080 = vpop.trf.xlu0
    %v1083 = vcombine.high %v1065, %v1065
    %v1085 = vunpack.c.l.s4 1966171168
    %v1086 = vunpack.c.0.s8 %v1085
    %v1087 = vlaneseq
    %v1088 = vshrl.u32 %v1087, 7
    %v1089 = vsub.s32 %v1086, %v1088
    %v1090 = vrot.slane %v1065, %v1089
    %v1092 = vunpack.c.l.s4 1966171168
    %v1093 = vunpack.c.0.s8 %v1092
    %v1094 = vlaneseq
    %v1095 = vshrl.u32 %v1094, 7
    %v1096 = vsub.s32 %v1093, %v1095
    %v1097 = vrot.slane %v1083, %v1096
    %v1098 = vcombine.high %v1090, %v1090
    %v1099 = vcombine.high %v1097, %v1097
    %v1101 = vunpack.c.l.s4 1966171168
    %v1102 = vunpack.c.0.s8 %v1101
    %v1103 = vlaneseq
    %v1104 = vshrl.u32 %v1103, 7
    %v1105 = vsub.s32 %v1102, %v1104
    %v1106 = vrot.slane %v1090, %v1105
    %v1108 = vunpack.c.l.s4 1966171168
    %v1109 = vunpack.c.0.s8 %v1108
    %v1110 = vlaneseq
    %v1111 = vshrl.u32 %v1110, 7
    %v1112 = vsub.s32 %v1109, %v1111
    %v1113 = vrot.slane %v1097, %v1112
    %v1115 = vunpack.c.l.s4 1966171168
    %v1116 = vunpack.c.0.s8 %v1115
    %v1117 = vlaneseq
    %v1118 = vshrl.u32 %v1117, 7
    %v1119 = vsub.s32 %v1116, %v1118
    %v1120 = vrot.slane %v1098, %v1119
    %v1122 = vunpack.c.l.s4 1966171168
    %v1123 = vunpack.c.0.s8 %v1122
    %v1124 = vlaneseq
    %v1125 = vshrl.u32 %v1124, 7
    %v1126 = vsub.s32 %v1123, %v1125
    %v1127 = vrot.slane %v1099, %v1126
    %v1128 = vcombine.high %v1106, %v1106
    %v1129 = vcombine.high %v1113, %v1113
    %v1130 = vcombine.high %v1120, %v1120
    %v1131 = vcombine.high %v1127, %v1127
    %v1132 = vcombine.high %v1066, %v1066
    %v1134 = vunpack.c.l.s4 1966171168
    %v1135 = vunpack.c.0.s8 %v1134
    %v1136 = vlaneseq
    %v1137 = vshrl.u32 %v1136, 7
    %v1138 = vsub.s32 %v1135, %v1137
    %v1139 = vrot.slane %v1066, %v1138
    %v1141 = vunpack.c.l.s4 1966171168
    %v1142 = vunpack.c.0.s8 %v1141
    %v1143 = vlaneseq
    %v1144 = vshrl.u32 %v1143, 7
    %v1145 = vsub.s32 %v1142, %v1144
    %v1146 = vrot.slane %v1132, %v1145
    %v1147 = vcombine.high %v1139, %v1139
    %v1148 = vcombine.high %v1146, %v1146
    %v1150 = vunpack.c.l.s4 1966171168
    %v1151 = vunpack.c.0.s8 %v1150
    %v1152 = vlaneseq
    %v1153 = vshrl.u32 %v1152, 7
    %v1154 = vsub.s32 %v1151, %v1153
    %v1155 = vrot.slane %v1139, %v1154
    %v1157 = vunpack.c.l.s4 1966171168
    %v1158 = vunpack.c.0.s8 %v1157
    %v1159 = vlaneseq
    %v1160 = vshrl.u32 %v1159, 7
    %v1161 = vsub.s32 %v1158, %v1160
    %v1162 = vrot.slane %v1146, %v1161
    %v1164 = vunpack.c.l.s4 1966171168
    %v1165 = vunpack.c.0.s8 %v1164
    %v1166 = vlaneseq
    %v1167 = vshrl.u32 %v1166, 7
    %v1168 = vsub.s32 %v1165, %v1167
    %v1169 = vrot.slane %v1147, %v1168
    %v1171 = vunpack.c.l.s4 1966171168
    %v1172 = vunpack.c.0.s8 %v1171
    %v1173 = vlaneseq
    %v1174 = vshrl.u32 %v1173, 7
    %v1175 = vsub.s32 %v1172, %v1174
    %v1176 = vrot.slane %v1148, %v1175
    %v1177 = vcombine.high %v1155, %v1155
    %v1178 = vcombine.high %v1162, %v1162
    %v1179 = vcombine.high %v1169, %v1169
    %v1180 = vcombine.high %v1176, %v1176
    %s1197 = scalar_lea.vmem [#allocation5], 48
    %1198 = vst.msk [vmem:[%s1197] sm:$0x1] %vm303, %v1106
    %1199 = vst.msk [vmem:[%s1197 + $0x1] sm:$0x1] %vm303, %v1120
    %1200 = vst.msk [vmem:[%s1197 + $0x2] sm:$0x1] %vm303, %v1128
    %1201 = vst.msk [vmem:[%s1197 + $0x3] sm:$0x1] %vm303, %v1130
    %1202 = vst.msk [vmem:[%s1197 + $0x4] sm:$0x1] %vm303, %v1113
    %1203 = vst.msk [vmem:[%s1197 + $0x5] sm:$0x1] %vm303, %v1127
    %1204 = vst.msk [vmem:[%s1197 + $0x6] sm:$0x1] %vm303, %v1129
    %1205 = vst.msk [vmem:[%s1197 + $0x7] sm:$0x1] %vm303, %v1131
    %1206 = vst.msk [vmem:[%s1197 + $0x8] sm:$0x1] %vm303, %v1155
    %1207 = vst.msk [vmem:[%s1197 + $0x9] sm:$0x1] %vm303, %v1169
    %1208 = vst.msk [vmem:[%s1197 + $0xa] sm:$0x1] %vm303, %v1177
    %1209 = vst.msk [vmem:[%s1197 + $0xb] sm:$0x1] %vm303, %v1179
    %1210 = vst.msk [vmem:[%s1197 + $0xc] sm:$0x1] %vm303, %v1162
    %1211 = vst.msk [vmem:[%s1197 + $0xd] sm:$0x1] %vm303, %v1176
    %1212 = vst.msk [vmem:[%s1197 + $0xe] sm:$0x1] %vm303, %v1178
    %1213 = vst.msk [vmem:[%s1197 + $0xf] sm:$0x1] %vm303, %v1180
    %s1214 = scalar_lea.vmem [#allocation2], 64
    %v1215 = vld [vmem:[%s1214] sm:$0x1]
    %v1216 = vld [vmem:[%s1214 + $0x1] sm:$0x1]
    %v1217 = vld [vmem:[%s1214 + $0x2] sm:$0x1]
    %v1218 = vld [vmem:[%s1214 + $0x3] sm:$0x1]
    %v1219 = vld [vmem:[%s1214 + $0x4] sm:$0x1]
    %v1220 = vld [vmem:[%s1214 + $0x5] sm:$0x1]
    %v1221 = vld [vmem:[%s1214 + $0x6] sm:$0x1]
    %v1222 = vld [vmem:[%s1214 + $0x7] sm:$0x1]
    %v1223 = vld [vmem:[%s1214 + $0x8] sm:$0x1]
    %v1224 = vld [vmem:[%s1214 + $0x9] sm:$0x1]
    %v1225 = vld [vmem:[%s1214 + $0xa] sm:$0x1]
    %v1226 = vld [vmem:[%s1214 + $0xb] sm:$0x1]
    %v1227 = vld [vmem:[%s1214 + $0xc] sm:$0x1]
    %v1228 = vld [vmem:[%s1214 + $0xd] sm:$0x1]
    %v1229 = vld [vmem:[%s1214 + $0xe] sm:$0x1]
    %v1230 = vld [vmem:[%s1214 + $0xf] sm:$0x1]
    %v1247 = vcombine.low %v1215, %v1216
    %v1248 = vcombine.low %v1217, %v1218
    %v1249 = vcombine.low %v1219, %v1220
    %v1250 = vcombine.low %v1221, %v1222
    %v1252 = vunpack.c.l.s4 1966171168
    %v1253 = vunpack.c.0.s8 %v1252
    %v1254 = vlaneseq
    %v1255 = vshrl.u32 %v1254, 7
    %v1256 = vsub.s32 %v1253, %v1255
    %v1257 = vrot.slane %v1247, %v1256
    %v1259 = vunpack.c.l.s4 1966171168
    %v1260 = vunpack.c.0.s8 %v1259
    %v1261 = vlaneseq
    %v1262 = vshrl.u32 %v1261, 7
    %v1263 = vsub.s32 %v1260, %v1262
    %v1264 = vrot.slane %v1248, %v1263
    %v1266 = vunpack.c.l.s4 1966171168
    %v1267 = vunpack.c.0.s8 %v1266
    %v1268 = vlaneseq
    %v1269 = vshrl.u32 %v1268, 7
    %v1270 = vsub.s32 %v1267, %v1269
    %v1271 = vrot.slane %v1249, %v1270
    %v1273 = vunpack.c.l.s4 1966171168
    %v1274 = vunpack.c.0.s8 %v1273
    %v1275 = vlaneseq
    %v1276 = vshrl.u32 %v1275, 7
    %v1277 = vsub.s32 %v1274, %v1276
    %v1278 = vrot.slane %v1250, %v1277
    %v1279 = vcombine.low %v1257, %v1264
    %v1280 = vcombine.low %v1271, %v1278
    %v1282 = vunpack.c.l.s4 1966171168
    %v1283 = vunpack.c.0.s8 %v1282
    %v1284 = vlaneseq
    %v1285 = vshrl.u32 %v1284, 7
    %v1286 = vsub.s32 %v1283, %v1285
    %v1287 = vrot.slane %v1279, %v1286
    %v1289 = vunpack.c.l.s4 1966171168
    %v1290 = vunpack.c.0.s8 %v1289
    %v1291 = vlaneseq
    %v1292 = vshrl.u32 %v1291, 7
    %v1293 = vsub.s32 %v1290, %v1292
    %v1294 = vrot.slane %v1280, %v1293
    %v1295 = vcombine.low %v1287, %v1294
    %v1296 = vcombine.low %v1223, %v1224
    %v1297 = vcombine.low %v1225, %v1226
    %v1298 = vcombine.low %v1227, %v1228
    %v1299 = vcombine.low %v1229, %v1230
    %v1301 = vunpack.c.l.s4 1966171168
    %v1302 = vunpack.c.0.s8 %v1301
    %v1303 = vlaneseq
    %v1304 = vshrl.u32 %v1303, 7
    %v1305 = vsub.s32 %v1302, %v1304
    %v1306 = vrot.slane %v1296, %v1305
    %v1308 = vunpack.c.l.s4 1966171168
    %v1309 = vunpack.c.0.s8 %v1308
    %v1310 = vlaneseq
    %v1311 = vshrl.u32 %v1310, 7
    %v1312 = vsub.s32 %v1309, %v1311
    %v1313 = vrot.slane %v1297, %v1312
    %v1315 = vunpack.c.l.s4 1966171168
    %v1316 = vunpack.c.0.s8 %v1315
    %v1317 = vlaneseq
    %v1318 = vshrl.u32 %v1317, 7
    %v1319 = vsub.s32 %v1316, %v1318
    %v1320 = vrot.slane %v1298, %v1319
    %v1322 = vunpack.c.l.s4 1966171168
    %v1323 = vunpack.c.0.s8 %v1322
    %v1324 = vlaneseq
    %v1325 = vshrl.u32 %v1324, 7
    %v1326 = vsub.s32 %v1323, %v1325
    %v1327 = vrot.slane %v1299, %v1326
    %v1328 = vcombine.low %v1306, %v1313
    %v1329 = vcombine.low %v1320, %v1327
    %v1331 = vunpack.c.l.s4 1966171168
    %v1332 = vunpack.c.0.s8 %v1331
    %v1333 = vlaneseq
    %v1334 = vshrl.u32 %v1333, 7
    %v1335 = vsub.s32 %v1332, %v1334
    %v1336 = vrot.slane %v1328, %v1335
    %v1338 = vunpack.c.l.s4 1966171168
    %v1339 = vunpack.c.0.s8 %v1338
    %v1340 = vlaneseq
    %v1341 = vshrl.u32 %v1340, 7
    %v1342 = vsub.s32 %v1339, %v1341
    %v1343 = vrot.slane %v1329, %v1342
    %v1344 = vcombine.low %v1336, %v1343
    %1347 = vxpose.xlu0.b32.start [1/16] %v1295, 128
    %1348 = vxpose.xlu0.b32.cont [2/16] %v1344, 128
    %1349 = vxpose.xlu0.b32.cont [3/16] 0.0, 128
    %1350 = vxpose.xlu0.b32.cont [4/16] 0.0, 128
    %1351 = vxpose.xlu0.b32.cont [5/16] 0.0, 128
    %1352 = vxpose.xlu0.b32.cont [6/16] 0.0, 128
    %1353 = vxpose.xlu0.b32.cont [7/16] 0.0, 128
    %1354 = vxpose.xlu0.b32.cont [8/16] 0.0, 128
    %1355 = vxpose.xlu0.b32.cont [9/16] 0.0, 128
    %1356 = vxpose.xlu0.b32.cont [10/16] 0.0, 128
    %1357 = vxpose.xlu0.b32.cont [11/16] 0.0, 128
    %1358 = vxpose.xlu0.b32.cont [12/16] 0.0, 128
    %1359 = vxpose.xlu0.b32.cont [13/16] 0.0, 128
    %1360 = vxpose.xlu0.b32.cont [14/16] 0.0, 128
    %1361 = vxpose.xlu0.b32.cont [15/16] 0.0, 128
    %1362 = vxpose.xlu0.b32.end [16/16] 0.0, 128
    %v1363 = vpop.trf.xlu0
    %v1364 = vpop.trf.xlu0
    %v1365 = vpop.trf.xlu0
    %v1366 = vpop.trf.xlu0
    %v1367 = vpop.trf.xlu0
    %v1368 = vpop.trf.xlu0
    %v1369 = vpop.trf.xlu0
    %v1370 = vpop.trf.xlu0
    %v1371 = vpop.trf.xlu0
    %v1372 = vpop.trf.xlu0
    %v1373 = vpop.trf.xlu0
    %v1374 = vpop.trf.xlu0
    %v1375 = vpop.trf.xlu0
    %v1376 = vpop.trf.xlu0
    %v1377 = vpop.trf.xlu0
    %v1378 = vpop.trf.xlu0
    %v1381 = vcombine.high %v1363, %v1363
    %v1383 = vunpack.c.l.s4 1966171168
    %v1384 = vunpack.c.0.s8 %v1383
    %v1385 = vlaneseq
    %v1386 = vshrl.u32 %v1385, 7
    %v1387 = vsub.s32 %v1384, %v1386
    %v1388 = vrot.slane %v1363, %v1387
    %v1390 = vunpack.c.l.s4 1966171168
    %v1391 = vunpack.c.0.s8 %v1390
    %v1392 = vlaneseq
    %v1393 = vshrl.u32 %v1392, 7
    %v1394 = vsub.s32 %v1391, %v1393
    %v1395 = vrot.slane %v1381, %v1394
    %v1396 = vcombine.high %v1388, %v1388
    %v1397 = vcombine.high %v1395, %v1395
    %v1399 = vunpack.c.l.s4 1966171168
    %v1400 = vunpack.c.0.s8 %v1399
    %v1401 = vlaneseq
    %v1402 = vshrl.u32 %v1401, 7
    %v1403 = vsub.s32 %v1400, %v1402
    %v1404 = vrot.slane %v1388, %v1403
    %v1406 = vunpack.c.l.s4 1966171168
    %v1407 = vunpack.c.0.s8 %v1406
    %v1408 = vlaneseq
    %v1409 = vshrl.u32 %v1408, 7
    %v1410 = vsub.s32 %v1407, %v1409
    %v1411 = vrot.slane %v1395, %v1410
    %v1413 = vunpack.c.l.s4 1966171168
    %v1414 = vunpack.c.0.s8 %v1413
    %v1415 = vlaneseq
    %v1416 = vshrl.u32 %v1415, 7
    %v1417 = vsub.s32 %v1414, %v1416
    %v1418 = vrot.slane %v1396, %v1417
    %v1420 = vunpack.c.l.s4 1966171168
    %v1421 = vunpack.c.0.s8 %v1420
    %v1422 = vlaneseq
    %v1423 = vshrl.u32 %v1422, 7
    %v1424 = vsub.s32 %v1421, %v1423
    %v1425 = vrot.slane %v1397, %v1424
    %v1426 = vcombine.high %v1404, %v1404
    %v1427 = vcombine.high %v1411, %v1411
    %v1428 = vcombine.high %v1418, %v1418
    %v1429 = vcombine.high %v1425, %v1425
    %v1430 = vcombine.high %v1364, %v1364
    %v1432 = vunpack.c.l.s4 1966171168
    %v1433 = vunpack.c.0.s8 %v1432
    %v1434 = vlaneseq
    %v1435 = vshrl.u32 %v1434, 7
    %v1436 = vsub.s32 %v1433, %v1435
    %v1437 = vrot.slane %v1364, %v1436
    %v1439 = vunpack.c.l.s4 1966171168
    %v1440 = vunpack.c.0.s8 %v1439
    %v1441 = vlaneseq
    %v1442 = vshrl.u32 %v1441, 7
    %v1443 = vsub.s32 %v1440, %v1442
    %v1444 = vrot.slane %v1430, %v1443
    %v1445 = vcombine.high %v1437, %v1437
    %v1446 = vcombine.high %v1444, %v1444
    %v1448 = vunpack.c.l.s4 1966171168
    %v1449 = vunpack.c.0.s8 %v1448
    %v1450 = vlaneseq
    %v1451 = vshrl.u32 %v1450, 7
    %v1452 = vsub.s32 %v1449, %v1451
    %v1453 = vrot.slane %v1437, %v1452
    %v1455 = vunpack.c.l.s4 1966171168
    %v1456 = vunpack.c.0.s8 %v1455
    %v1457 = vlaneseq
    %v1458 = vshrl.u32 %v1457, 7
    %v1459 = vsub.s32 %v1456, %v1458
    %v1460 = vrot.slane %v1444, %v1459
    %v1462 = vunpack.c.l.s4 1966171168
    %v1463 = vunpack.c.0.s8 %v1462
    %v1464 = vlaneseq
    %v1465 = vshrl.u32 %v1464, 7
    %v1466 = vsub.s32 %v1463, %v1465
    %v1467 = vrot.slane %v1445, %v1466
    %v1469 = vunpack.c.l.s4 1966171168
    %v1470 = vunpack.c.0.s8 %v1469
    %v1471 = vlaneseq
    %v1472 = vshrl.u32 %v1471, 7
    %v1473 = vsub.s32 %v1470, %v1472
    %v1474 = vrot.slane %v1446, %v1473
    %v1475 = vcombine.high %v1453, %v1453
    %v1476 = vcombine.high %v1460, %v1460
    %v1477 = vcombine.high %v1467, %v1467
    %v1478 = vcombine.high %v1474, %v1474
    %s1495 = scalar_lea.vmem [#allocation5], 64
    %1496 = vst.msk [vmem:[%s1495] sm:$0x1] %vm303, %v1404
    %1497 = vst.msk [vmem:[%s1495 + $0x1] sm:$0x1] %vm303, %v1418
    %1498 = vst.msk [vmem:[%s1495 + $0x2] sm:$0x1] %vm303, %v1426
    %1499 = vst.msk [vmem:[%s1495 + $0x3] sm:$0x1] %vm303, %v1428
    %1500 = vst.msk [vmem:[%s1495 + $0x4] sm:$0x1] %vm303, %v1411
    %1501 = vst.msk [vmem:[%s1495 + $0x5] sm:$0x1] %vm303, %v1425
    %1502 = vst.msk [vmem:[%s1495 + $0x6] sm:$0x1] %vm303, %v1427
    %1503 = vst.msk [vmem:[%s1495 + $0x7] sm:$0x1] %vm303, %v1429
    %1504 = vst.msk [vmem:[%s1495 + $0x8] sm:$0x1] %vm303, %v1453
    %1505 = vst.msk [vmem:[%s1495 + $0x9] sm:$0x1] %vm303, %v1467
    %1506 = vst.msk [vmem:[%s1495 + $0xa] sm:$0x1] %vm303, %v1475
    %1507 = vst.msk [vmem:[%s1495 + $0xb] sm:$0x1] %vm303, %v1477
    %1508 = vst.msk [vmem:[%s1495 + $0xc] sm:$0x1] %vm303, %v1460
    %1509 = vst.msk [vmem:[%s1495 + $0xd] sm:$0x1] %vm303, %v1474
    %1510 = vst.msk [vmem:[%s1495 + $0xe] sm:$0x1] %vm303, %v1476
    %1511 = vst.msk [vmem:[%s1495 + $0xf] sm:$0x1] %vm303, %v1478
    %s1512 = scalar_lea.vmem [#allocation2], 80
    %v1513 = vld [vmem:[%s1512] sm:$0x1]
    %v1514 = vld [vmem:[%s1512 + $0x1] sm:$0x1]
    %v1515 = vld [vmem:[%s1512 + $0x2] sm:$0x1]
    %v1516 = vld [vmem:[%s1512 + $0x3] sm:$0x1]
    %v1517 = vld [vmem:[%s1512 + $0x4] sm:$0x1]
    %v1518 = vld [vmem:[%s1512 + $0x5] sm:$0x1]
    %v1519 = vld [vmem:[%s1512 + $0x6] sm:$0x1]
    %v1520 = vld [vmem:[%s1512 + $0x7] sm:$0x1]
    %v1521 = vld [vmem:[%s1512 + $0x8] sm:$0x1]
    %v1522 = vld [vmem:[%s1512 + $0x9] sm:$0x1]
    %v1523 = vld [vmem:[%s1512 + $0xa] sm:$0x1]
    %v1524 = vld [vmem:[%s1512 + $0xb] sm:$0x1]
    %v1525 = vld [vmem:[%s1512 + $0xc] sm:$0x1]
    %v1526 = vld [vmem:[%s1512 + $0xd] sm:$0x1]
    %v1527 = vld [vmem:[%s1512 + $0xe] sm:$0x1]
    %v1528 = vld [vmem:[%s1512 + $0xf] sm:$0x1]
    %v1545 = vcombine.low %v1513, %v1514
    %v1546 = vcombine.low %v1515, %v1516
    %v1547 = vcombine.low %v1517, %v1518
    %v1548 = vcombine.low %v1519, %v1520
    %v1550 = vunpack.c.l.s4 1966171168
    %v1551 = vunpack.c.0.s8 %v1550
    %v1552 = vlaneseq
    %v1553 = vshrl.u32 %v1552, 7
    %v1554 = vsub.s32 %v1551, %v1553
    %v1555 = vrot.slane %v1545, %v1554
    %v1557 = vunpack.c.l.s4 1966171168
    %v1558 = vunpack.c.0.s8 %v1557
    %v1559 = vlaneseq
    %v1560 = vshrl.u32 %v1559, 7
    %v1561 = vsub.s32 %v1558, %v1560
    %v1562 = vrot.slane %v1546, %v1561
    %v1564 = vunpack.c.l.s4 1966171168
    %v1565 = vunpack.c.0.s8 %v1564
    %v1566 = vlaneseq
    %v1567 = vshrl.u32 %v1566, 7
    %v1568 = vsub.s32 %v1565, %v1567
    %v1569 = vrot.slane %v1547, %v1568
    %v1571 = vunpack.c.l.s4 1966171168
    %v1572 = vunpack.c.0.s8 %v1571
    %v1573 = vlaneseq
    %v1574 = vshrl.u32 %v1573, 7
    %v1575 = vsub.s32 %v1572, %v1574
    %v1576 = vrot.slane %v1548, %v1575
    %v1577 = vcombine.low %v1555, %v1562
    %v1578 = vcombine.low %v1569, %v1576
    %v1580 = vunpack.c.l.s4 1966171168
    %v1581 = vunpack.c.0.s8 %v1580
    %v1582 = vlaneseq
    %v1583 = vshrl.u32 %v1582, 7
    %v1584 = vsub.s32 %v1581, %v1583
    %v1585 = vrot.slane %v1577, %v1584
    %v1587 = vunpack.c.l.s4 1966171168
    %v1588 = vunpack.c.0.s8 %v1587
    %v1589 = vlaneseq
    %v1590 = vshrl.u32 %v1589, 7
    %v1591 = vsub.s32 %v1588, %v1590
    %v1592 = vrot.slane %v1578, %v1591
    %v1593 = vcombine.low %v1585, %v1592
    %v1594 = vcombine.low %v1521, %v1522
    %v1595 = vcombine.low %v1523, %v1524
    %v1596 = vcombine.low %v1525, %v1526
    %v1597 = vcombine.low %v1527, %v1528
    %v1599 = vunpack.c.l.s4 1966171168
    %v1600 = vunpack.c.0.s8 %v1599
    %v1601 = vlaneseq
    %v1602 = vshrl.u32 %v1601, 7
    %v1603 = vsub.s32 %v1600, %v1602
    %v1604 = vrot.slane %v1594, %v1603
    %v1606 = vunpack.c.l.s4 1966171168
    %v1607 = vunpack.c.0.s8 %v1606
    %v1608 = vlaneseq
    %v1609 = vshrl.u32 %v1608, 7
    %v1610 = vsub.s32 %v1607, %v1609
    %v1611 = vrot.slane %v1595, %v1610
    %v1613 = vunpack.c.l.s4 1966171168
    %v1614 = vunpack.c.0.s8 %v1613
    %v1615 = vlaneseq
    %v1616 = vshrl.u32 %v1615, 7
    %v1617 = vsub.s32 %v1614, %v1616
    %v1618 = vrot.slane %v1596, %v1617
    %v1620 = vunpack.c.l.s4 1966171168
    %v1621 = vunpack.c.0.s8 %v1620
    %v1622 = vlaneseq
    %v1623 = vshrl.u32 %v1622, 7
    %v1624 = vsub.s32 %v1621, %v1623
    %v1625 = vrot.slane %v1597, %v1624
    %v1626 = vcombine.low %v1604, %v1611
    %v1627 = vcombine.low %v1618, %v1625
    %v1629 = vunpack.c.l.s4 1966171168
    %v1630 = vunpack.c.0.s8 %v1629
    %v1631 = vlaneseq
    %v1632 = vshrl.u32 %v1631, 7
    %v1633 = vsub.s32 %v1630, %v1632
    %v1634 = vrot.slane %v1626, %v1633
    %v1636 = vunpack.c.l.s4 1966171168
    %v1637 = vunpack.c.0.s8 %v1636
    %v1638 = vlaneseq
    %v1639 = vshrl.u32 %v1638, 7
    %v1640 = vsub.s32 %v1637, %v1639
    %v1641 = vrot.slane %v1627, %v1640
    %v1642 = vcombine.low %v1634, %v1641
    %1645 = vxpose.xlu0.b32.start [1/16] %v1593, 128
    %1646 = vxpose.xlu0.b32.cont [2/16] %v1642, 128
    %1647 = vxpose.xlu0.b32.cont [3/16] 0.0, 128
    %1648 = vxpose.xlu0.b32.cont [4/16] 0.0, 128
    %1649 = vxpose.xlu0.b32.cont [5/16] 0.0, 128
    %1650 = vxpose.xlu0.b32.cont [6/16] 0.0, 128
    %1651 = vxpose.xlu0.b32.cont [7/16] 0.0, 128
    %1652 = vxpose.xlu0.b32.cont [8/16] 0.0, 128
    %1653 = vxpose.xlu0.b32.cont [9/16] 0.0, 128
    %1654 = vxpose.xlu0.b32.cont [10/16] 0.0, 128
    %1655 = vxpose.xlu0.b32.cont [11/16] 0.0, 128
    %1656 = vxpose.xlu0.b32.cont [12/16] 0.0, 128
    %1657 = vxpose.xlu0.b32.cont [13/16] 0.0, 128
    %1658 = vxpose.xlu0.b32.cont [14/16] 0.0, 128
    %1659 = vxpose.xlu0.b32.cont [15/16] 0.0, 128
    %1660 = vxpose.xlu0.b32.end [16/16] 0.0, 128
    %v1661 = vpop.trf.xlu0
    %v1662 = vpop.trf.xlu0
    %v1663 = vpop.trf.xlu0
    %v1664 = vpop.trf.xlu0
    %v1665 = vpop.trf.xlu0
    %v1666 = vpop.trf.xlu0
    %v1667 = vpop.trf.xlu0
    %v1668 = vpop.trf.xlu0
    %v1669 = vpop.trf.xlu0
    %v1670 = vpop.trf.xlu0
    %v1671 = vpop.trf.xlu0
    %v1672 = vpop.trf.xlu0
    %v1673 = vpop.trf.xlu0
    %v1674 = vpop.trf.xlu0
    %v1675 = vpop.trf.xlu0
    %v1676 = vpop.trf.xlu0
    %v1679 = vcombine.high %v1661, %v1661
    %v1681 = vunpack.c.l.s4 1966171168
    %v1682 = vunpack.c.0.s8 %v1681
    %v1683 = vlaneseq
    %v1684 = vshrl.u32 %v1683, 7
    %v1685 = vsub.s32 %v1682, %v1684
    %v1686 = vrot.slane %v1661, %v1685
    %v1688 = vunpack.c.l.s4 1966171168
    %v1689 = vunpack.c.0.s8 %v1688
    %v1690 = vlaneseq
    %v1691 = vshrl.u32 %v1690, 7
    %v1692 = vsub.s32 %v1689, %v1691
    %v1693 = vrot.slane %v1679, %v1692
    %v1694 = vcombine.high %v1686, %v1686
    %v1695 = vcombine.high %v1693, %v1693
    %v1697 = vunpack.c.l.s4 1966171168
    %v1698 = vunpack.c.0.s8 %v1697
    %v1699 = vlaneseq
    %v1700 = vshrl.u32 %v1699, 7
    %v1701 = vsub.s32 %v1698, %v1700
    %v1702 = vrot.slane %v1686, %v1701
    %v1704 = vunpack.c.l.s4 1966171168
    %v1705 = vunpack.c.0.s8 %v1704
    %v1706 = vlaneseq
    %v1707 = vshrl.u32 %v1706, 7
    %v1708 = vsub.s32 %v1705, %v1707
    %v1709 = vrot.slane %v1693, %v1708
    %v1711 = vunpack.c.l.s4 1966171168
    %v1712 = vunpack.c.0.s8 %v1711
    %v1713 = vlaneseq
    %v1714 = vshrl.u32 %v1713, 7
    %v1715 = vsub.s32 %v1712, %v1714
    %v1716 = vrot.slane %v1694, %v1715
    %v1718 = vunpack.c.l.s4 1966171168
    %v1719 = vunpack.c.0.s8 %v1718
    %v1720 = vlaneseq
    %v1721 = vshrl.u32 %v1720, 7
    %v1722 = vsub.s32 %v1719, %v1721
    %v1723 = vrot.slane %v1695, %v1722
    %v1724 = vcombine.high %v1702, %v1702
    %v1725 = vcombine.high %v1709, %v1709
    %v1726 = vcombine.high %v1716, %v1716
    %v1727 = vcombine.high %v1723, %v1723
    %v1728 = vcombine.high %v1662, %v1662
    %v1730 = vunpack.c.l.s4 1966171168
    %v1731 = vunpack.c.0.s8 %v1730
    %v1732 = vlaneseq
    %v1733 = vshrl.u32 %v1732, 7
    %v1734 = vsub.s32 %v1731, %v1733
    %v1735 = vrot.slane %v1662, %v1734
    %v1737 = vunpack.c.l.s4 1966171168
    %v1738 = vunpack.c.0.s8 %v1737
    %v1739 = vlaneseq
    %v1740 = vshrl.u32 %v1739, 7
    %v1741 = vsub.s32 %v1738, %v1740
    %v1742 = vrot.slane %v1728, %v1741
    %v1743 = vcombine.high %v1735, %v1735
    %v1744 = vcombine.high %v1742, %v1742
    %v1746 = vunpack.c.l.s4 1966171168
    %v1747 = vunpack.c.0.s8 %v1746
    %v1748 = vlaneseq
    %v1749 = vshrl.u32 %v1748, 7
    %v1750 = vsub.s32 %v1747, %v1749
    %v1751 = vrot.slane %v1735, %v1750
    %v1753 = vunpack.c.l.s4 1966171168
    %v1754 = vunpack.c.0.s8 %v1753
    %v1755 = vlaneseq
    %v1756 = vshrl.u32 %v1755, 7
    %v1757 = vsub.s32 %v1754, %v1756
    %v1758 = vrot.slane %v1742, %v1757
    %v1760 = vunpack.c.l.s4 1966171168
    %v1761 = vunpack.c.0.s8 %v1760
    %v1762 = vlaneseq
    %v1763 = vshrl.u32 %v1762, 7
    %v1764 = vsub.s32 %v1761, %v1763
    %v1765 = vrot.slane %v1743, %v1764
    %v1767 = vunpack.c.l.s4 1966171168
    %v1768 = vunpack.c.0.s8 %v1767
    %v1769 = vlaneseq
    %v1770 = vshrl.u32 %v1769, 7
    %v1771 = vsub.s32 %v1768, %v1770
    %v1772 = vrot.slane %v1744, %v1771
    %v1773 = vcombine.high %v1751, %v1751
    %v1774 = vcombine.high %v1758, %v1758
    %v1775 = vcombine.high %v1765, %v1765
    %v1776 = vcombine.high %v1772, %v1772
    %s1793 = scalar_lea.vmem [#allocation5], 80
    %1794 = vst.msk [vmem:[%s1793] sm:$0x1] %vm303, %v1702
    %1795 = vst.msk [vmem:[%s1793 + $0x1] sm:$0x1] %vm303, %v1716
    %1796 = vst.msk [vmem:[%s1793 + $0x2] sm:$0x1] %vm303, %v1724
    %1797 = vst.msk [vmem:[%s1793 + $0x3] sm:$0x1] %vm303, %v1726
    %1798 = vst.msk [vmem:[%s1793 + $0x4] sm:$0x1] %vm303, %v1709
    %1799 = vst.msk [vmem:[%s1793 + $0x5] sm:$0x1] %vm303, %v1723
    %1800 = vst.msk [vmem:[%s1793 + $0x6] sm:$0x1] %vm303, %v1725
    %1801 = vst.msk [vmem:[%s1793 + $0x7] sm:$0x1] %vm303, %v1727
    %1802 = vst.msk [vmem:[%s1793 + $0x8] sm:$0x1] %vm303, %v1751
    %1803 = vst.msk [vmem:[%s1793 + $0x9] sm:$0x1] %vm303, %v1765
    %1804 = vst.msk [vmem:[%s1793 + $0xa] sm:$0x1] %vm303, %v1773
    %1805 = vst.msk [vmem:[%s1793 + $0xb] sm:$0x1] %vm303, %v1775
    %1806 = vst.msk [vmem:[%s1793 + $0xc] sm:$0x1] %vm303, %v1758
    %1807 = vst.msk [vmem:[%s1793 + $0xd] sm:$0x1] %vm303, %v1772
    %1808 = vst.msk [vmem:[%s1793 + $0xe] sm:$0x1] %vm303, %v1774
    %1809 = vst.msk [vmem:[%s1793 + $0xf] sm:$0x1] %vm303, %v1776
    %s1810 = scalar_lea.vmem [#allocation2], 96
    %v1811 = vld [vmem:[%s1810] sm:$0x1]
    %v1812 = vld [vmem:[%s1810 + $0x1] sm:$0x1]
    %v1813 = vld [vmem:[%s1810 + $0x2] sm:$0x1]
    %v1814 = vld [vmem:[%s1810 + $0x3] sm:$0x1]
    %v1815 = vld [vmem:[%s1810 + $0x4] sm:$0x1]
    %v1816 = vld [vmem:[%s1810 + $0x5] sm:$0x1]
    %v1817 = vld [vmem:[%s1810 + $0x6] sm:$0x1]
    %v1818 = vld [vmem:[%s1810 + $0x7] sm:$0x1]
    %v1819 = vld [vmem:[%s1810 + $0x8] sm:$0x1]
    %v1820 = vld [vmem:[%s1810 + $0x9] sm:$0x1]
    %v1821 = vld [vmem:[%s1810 + $0xa] sm:$0x1]
    %v1822 = vld [vmem:[%s1810 + $0xb] sm:$0x1]
    %v1823 = vld [vmem:[%s1810 + $0xc] sm:$0x1]
    %v1824 = vld [vmem:[%s1810 + $0xd] sm:$0x1]
    %v1825 = vld [vmem:[%s1810 + $0xe] sm:$0x1]
    %v1826 = vld [vmem:[%s1810 + $0xf] sm:$0x1]
    %v1843 = vcombine.low %v1811, %v1812
    %v1844 = vcombine.low %v1813, %v1814
    %v1845 = vcombine.low %v1815, %v1816
    %v1846 = vcombine.low %v1817, %v1818
    %v1848 = vunpack.c.l.s4 1966171168
    %v1849 = vunpack.c.0.s8 %v1848
    %v1850 = vlaneseq
    %v1851 = vshrl.u32 %v1850, 7
    %v1852 = vsub.s32 %v1849, %v1851
    %v1853 = vrot.slane %v1843, %v1852
    %v1855 = vunpack.c.l.s4 1966171168
    %v1856 = vunpack.c.0.s8 %v1855
    %v1857 = vlaneseq
    %v1858 = vshrl.u32 %v1857, 7
    %v1859 = vsub.s32 %v1856, %v1858
    %v1860 = vrot.slane %v1844, %v1859
    %v1862 = vunpack.c.l.s4 1966171168
    %v1863 = vunpack.c.0.s8 %v1862
    %v1864 = vlaneseq
    %v1865 = vshrl.u32 %v1864, 7
    %v1866 = vsub.s32 %v1863, %v1865
    %v1867 = vrot.slane %v1845, %v1866
    %v1869 = vunpack.c.l.s4 1966171168
    %v1870 = vunpack.c.0.s8 %v1869
    %v1871 = vlaneseq
    %v1872 = vshrl.u32 %v1871, 7
    %v1873 = vsub.s32 %v1870, %v1872
    %v1874 = vrot.slane %v1846, %v1873
    %v1875 = vcombine.low %v1853, %v1860
    %v1876 = vcombine.low %v1867, %v1874
    %v1878 = vunpack.c.l.s4 1966171168
    %v1879 = vunpack.c.0.s8 %v1878
    %v1880 = vlaneseq
    %v1881 = vshrl.u32 %v1880, 7
    %v1882 = vsub.s32 %v1879, %v1881
    %v1883 = vrot.slane %v1875, %v1882
    %v1885 = vunpack.c.l.s4 1966171168
    %v1886 = vunpack.c.0.s8 %v1885
    %v1887 = vlaneseq
    %v1888 = vshrl.u32 %v1887, 7
    %v1889 = vsub.s32 %v1886, %v1888
    %v1890 = vrot.slane %v1876, %v1889
    %v1891 = vcombine.low %v1883, %v1890
    %v1892 = vcombine.low %v1819, %v1820
    %v1893 = vcombine.low %v1821, %v1822
    %v1894 = vcombine.low %v1823, %v1824
    %v1895 = vcombine.low %v1825, %v1826
    %v1897 = vunpack.c.l.s4 1966171168
    %v1898 = vunpack.c.0.s8 %v1897
    %v1899 = vlaneseq
    %v1900 = vshrl.u32 %v1899, 7
    %v1901 = vsub.s32 %v1898, %v1900
    %v1902 = vrot.slane %v1892, %v1901
    %v1904 = vunpack.c.l.s4 1966171168
    %v1905 = vunpack.c.0.s8 %v1904
    %v1906 = vlaneseq
    %v1907 = vshrl.u32 %v1906, 7
    %v1908 = vsub.s32 %v1905, %v1907
    %v1909 = vrot.slane %v1893, %v1908
    %v1911 = vunpack.c.l.s4 1966171168
    %v1912 = vunpack.c.0.s8 %v1911
    %v1913 = vlaneseq
    %v1914 = vshrl.u32 %v1913, 7
    %v1915 = vsub.s32 %v1912, %v1914
    %v1916 = vrot.slane %v1894, %v1915
    %v1918 = vunpack.c.l.s4 1966171168
    %v1919 = vunpack.c.0.s8 %v1918
    %v1920 = vlaneseq
    %v1921 = vshrl.u32 %v1920, 7
    %v1922 = vsub.s32 %v1919, %v1921
    %v1923 = vrot.slane %v1895, %v1922
    %v1924 = vcombine.low %v1902, %v1909
    %v1925 = vcombine.low %v1916, %v1923
    %v1927 = vunpack.c.l.s4 1966171168
    %v1928 = vunpack.c.0.s8 %v1927
    %v1929 = vlaneseq
    %v1930 = vshrl.u32 %v1929, 7
    %v1931 = vsub.s32 %v1928, %v1930
    %v1932 = vrot.slane %v1924, %v1931
    %v1934 = vunpack.c.l.s4 1966171168
    %v1935 = vunpack.c.0.s8 %v1934
    %v1936 = vlaneseq
    %v1937 = vshrl.u32 %v1936, 7
    %v1938 = vsub.s32 %v1935, %v1937
    %v1939 = vrot.slane %v1925, %v1938
    %v1940 = vcombine.low %v1932, %v1939
    %1943 = vxpose.xlu0.b32.start [1/16] %v1891, 128
    %1944 = vxpose.xlu0.b32.cont [2/16] %v1940, 128
    %1945 = vxpose.xlu0.b32.cont [3/16] 0.0, 128
    %1946 = vxpose.xlu0.b32.cont [4/16] 0.0, 128
    %1947 = vxpose.xlu0.b32.cont [5/16] 0.0, 128
    %1948 = vxpose.xlu0.b32.cont [6/16] 0.0, 128
    %1949 = vxpose.xlu0.b32.cont [7/16] 0.0, 128
    %1950 = vxpose.xlu0.b32.cont [8/16] 0.0, 128
    %1951 = vxpose.xlu0.b32.cont [9/16] 0.0, 128
    %1952 = vxpose.xlu0.b32.cont [10/16] 0.0, 128
    %1953 = vxpose.xlu0.b32.cont [11/16] 0.0, 128
    %1954 = vxpose.xlu0.b32.cont [12/16] 0.0, 128
    %1955 = vxpose.xlu0.b32.cont [13/16] 0.0, 128
    %1956 = vxpose.xlu0.b32.cont [14/16] 0.0, 128
    %1957 = vxpose.xlu0.b32.cont [15/16] 0.0, 128
    %1958 = vxpose.xlu0.b32.end [16/16] 0.0, 128
    %v1959 = vpop.trf.xlu0
    %v1960 = vpop.trf.xlu0
    %v1961 = vpop.trf.xlu0
    %v1962 = vpop.trf.xlu0
    %v1963 = vpop.trf.xlu0
    %v1964 = vpop.trf.xlu0
    %v1965 = vpop.trf.xlu0
    %v1966 = vpop.trf.xlu0
    %v1967 = vpop.trf.xlu0
    %v1968 = vpop.trf.xlu0
    %v1969 = vpop.trf.xlu0
    %v1970 = vpop.trf.xlu0
    %v1971 = vpop.trf.xlu0
    %v1972 = vpop.trf.xlu0
    %v1973 = vpop.trf.xlu0
    %v1974 = vpop.trf.xlu0
    %v1977 = vcombine.high %v1959, %v1959
    %v1979 = vunpack.c.l.s4 1966171168
    %v1980 = vunpack.c.0.s8 %v1979
    %v1981 = vlaneseq
    %v1982 = vshrl.u32 %v1981, 7
    %v1983 = vsub.s32 %v1980, %v1982
    %v1984 = vrot.slane %v1959, %v1983
    %v1986 = vunpack.c.l.s4 1966171168
    %v1987 = vunpack.c.0.s8 %v1986
    %v1988 = vlaneseq
    %v1989 = vshrl.u32 %v1988, 7
    %v1990 = vsub.s32 %v1987, %v1989
    %v1991 = vrot.slane %v1977, %v1990
    %v1992 = vcombine.high %v1984, %v1984
    %v1993 = vcombine.high %v1991, %v1991
    %v1995 = vunpack.c.l.s4 1966171168
    %v1996 = vunpack.c.0.s8 %v1995
    %v1997 = vlaneseq
    %v1998 = vshrl.u32 %v1997, 7
    %v1999 = vsub.s32 %v1996, %v1998
    %v2000 = vrot.slane %v1984, %v1999
    %v2002 = vunpack.c.l.s4 1966171168
    %v2003 = vunpack.c.0.s8 %v2002
    %v2004 = vlaneseq
    %v2005 = vshrl.u32 %v2004, 7
    %v2006 = vsub.s32 %v2003, %v2005
    %v2007 = vrot.slane %v1991, %v2006
    %v2009 = vunpack.c.l.s4 1966171168
    %v2010 = vunpack.c.0.s8 %v2009
    %v2011 = vlaneseq
    %v2012 = vshrl.u32 %v2011, 7
    %v2013 = vsub.s32 %v2010, %v2012
    %v2014 = vrot.slane %v1992, %v2013
    %v2016 = vunpack.c.l.s4 1966171168
    %v2017 = vunpack.c.0.s8 %v2016
    %v2018 = vlaneseq
    %v2019 = vshrl.u32 %v2018, 7
    %v2020 = vsub.s32 %v2017, %v2019
    %v2021 = vrot.slane %v1993, %v2020
    %v2022 = vcombine.high %v2000, %v2000
    %v2023 = vcombine.high %v2007, %v2007
    %v2024 = vcombine.high %v2014, %v2014
    %v2025 = vcombine.high %v2021, %v2021
    %v2026 = vcombine.high %v1960, %v1960
    %v2028 = vunpack.c.l.s4 1966171168
    %v2029 = vunpack.c.0.s8 %v2028
    %v2030 = vlaneseq
    %v2031 = vshrl.u32 %v2030, 7
    %v2032 = vsub.s32 %v2029, %v2031
    %v2033 = vrot.slane %v1960, %v2032
    %v2035 = vunpack.c.l.s4 1966171168
    %v2036 = vunpack.c.0.s8 %v2035
    %v2037 = vlaneseq
    %v2038 = vshrl.u32 %v2037, 7
    %v2039 = vsub.s32 %v2036, %v2038
    %v2040 = vrot.slane %v2026, %v2039
    %v2041 = vcombine.high %v2033, %v2033
    %v2042 = vcombine.high %v2040, %v2040
    %v2044 = vunpack.c.l.s4 1966171168
    %v2045 = vunpack.c.0.s8 %v2044
    %v2046 = vlaneseq
    %v2047 = vshrl.u32 %v2046, 7
    %v2048 = vsub.s32 %v2045, %v2047
    %v2049 = vrot.slane %v2033, %v2048
    %v2051 = vunpack.c.l.s4 1966171168
    %v2052 = vunpack.c.0.s8 %v2051
    %v2053 = vlaneseq
    %v2054 = vshrl.u32 %v2053, 7
    %v2055 = vsub.s32 %v2052, %v2054
    %v2056 = vrot.slane %v2040, %v2055
    %v2058 = vunpack.c.l.s4 1966171168
    %v2059 = vunpack.c.0.s8 %v2058
    %v2060 = vlaneseq
    %v2061 = vshrl.u32 %v2060, 7
    %v2062 = vsub.s32 %v2059, %v2061
    %v2063 = vrot.slane %v2041, %v2062
    %v2065 = vunpack.c.l.s4 1966171168
    %v2066 = vunpack.c.0.s8 %v2065
    %v2067 = vlaneseq
    %v2068 = vshrl.u32 %v2067, 7
    %v2069 = vsub.s32 %v2066, %v2068
    %v2070 = vrot.slane %v2042, %v2069
    %v2071 = vcombine.high %v2049, %v2049
    %v2072 = vcombine.high %v2056, %v2056
    %v2073 = vcombine.high %v2063, %v2063
    %v2074 = vcombine.high %v2070, %v2070
    %s2091 = scalar_lea.vmem [#allocation5], 96
    %2092 = vst.msk [vmem:[%s2091] sm:$0x1] %vm303, %v2000
    %2093 = vst.msk [vmem:[%s2091 + $0x1] sm:$0x1] %vm303, %v2014
    %2094 = vst.msk [vmem:[%s2091 + $0x2] sm:$0x1] %vm303, %v2022
    %2095 = vst.msk [vmem:[%s2091 + $0x3] sm:$0x1] %vm303, %v2024
    %2096 = vst.msk [vmem:[%s2091 + $0x4] sm:$0x1] %vm303, %v2007
    %2097 = vst.msk [vmem:[%s2091 + $0x5] sm:$0x1] %vm303, %v2021
    %2098 = vst.msk [vmem:[%s2091 + $0x6] sm:$0x1] %vm303, %v2023
    %2099 = vst.msk [vmem:[%s2091 + $0x7] sm:$0x1] %vm303, %v2025
    %2100 = vst.msk [vmem:[%s2091 + $0x8] sm:$0x1] %vm303, %v2049
    %2101 = vst.msk [vmem:[%s2091 + $0x9] sm:$0x1] %vm303, %v2063
    %2102 = vst.msk [vmem:[%s2091 + $0xa] sm:$0x1] %vm303, %v2071
    %2103 = vst.msk [vmem:[%s2091 + $0xb] sm:$0x1] %vm303, %v2073
    %2104 = vst.msk [vmem:[%s2091 + $0xc] sm:$0x1] %vm303, %v2056
    %2105 = vst.msk [vmem:[%s2091 + $0xd] sm:$0x1] %vm303, %v2070
    %2106 = vst.msk [vmem:[%s2091 + $0xe] sm:$0x1] %vm303, %v2072
    %2107 = vst.msk [vmem:[%s2091 + $0xf] sm:$0x1] %vm303, %v2074
    %s2108 = scalar_lea.vmem [#allocation2], 112
    %v2109 = vld [vmem:[%s2108] sm:$0x1]
    %v2110 = vld [vmem:[%s2108 + $0x1] sm:$0x1]
    %v2111 = vld [vmem:[%s2108 + $0x2] sm:$0x1]
    %v2112 = vld [vmem:[%s2108 + $0x3] sm:$0x1]
    %v2113 = vld [vmem:[%s2108 + $0x4] sm:$0x1]
    %v2114 = vld [vmem:[%s2108 + $0x5] sm:$0x1]
    %v2115 = vld [vmem:[%s2108 + $0x6] sm:$0x1]
    %v2116 = vld [vmem:[%s2108 + $0x7] sm:$0x1]
    %v2117 = vld [vmem:[%s2108 + $0x8] sm:$0x1]
    %v2118 = vld [vmem:[%s2108 + $0x9] sm:$0x1]
    %v2119 = vld [vmem:[%s2108 + $0xa] sm:$0x1]
    %v2120 = vld [vmem:[%s2108 + $0xb] sm:$0x1]
    %v2121 = vld [vmem:[%s2108 + $0xc] sm:$0x1]
    %v2122 = vld [vmem:[%s2108 + $0xd] sm:$0x1]
    %v2123 = vld [vmem:[%s2108 + $0xe] sm:$0x1]
    %v2124 = vld [vmem:[%s2108 + $0xf] sm:$0x1]
    %v2141 = vcombine.low %v2109, %v2110
    %v2142 = vcombine.low %v2111, %v2112
    %v2143 = vcombine.low %v2113, %v2114
    %v2144 = vcombine.low %v2115, %v2116
    %v2146 = vunpack.c.l.s4 1966171168
    %v2147 = vunpack.c.0.s8 %v2146
    %v2148 = vlaneseq
    %v2149 = vshrl.u32 %v2148, 7
    %v2150 = vsub.s32 %v2147, %v2149
    %v2151 = vrot.slane %v2141, %v2150
    %v2153 = vunpack.c.l.s4 1966171168
    %v2154 = vunpack.c.0.s8 %v2153
    %v2155 = vlaneseq
    %v2156 = vshrl.u32 %v2155, 7
    %v2157 = vsub.s32 %v2154, %v2156
    %v2158 = vrot.slane %v2142, %v2157
    %v2160 = vunpack.c.l.s4 1966171168
    %v2161 = vunpack.c.0.s8 %v2160
    %v2162 = vlaneseq
    %v2163 = vshrl.u32 %v2162, 7
    %v2164 = vsub.s32 %v2161, %v2163
    %v2165 = vrot.slane %v2143, %v2164
    %v2167 = vunpack.c.l.s4 1966171168
    %v2168 = vunpack.c.0.s8 %v2167
    %v2169 = vlaneseq
    %v2170 = vshrl.u32 %v2169, 7
    %v2171 = vsub.s32 %v2168, %v2170
    %v2172 = vrot.slane %v2144, %v2171
    %v2173 = vcombine.low %v2151, %v2158
    %v2174 = vcombine.low %v2165, %v2172
    %v2176 = vunpack.c.l.s4 1966171168
    %v2177 = vunpack.c.0.s8 %v2176
    %v2178 = vlaneseq
    %v2179 = vshrl.u32 %v2178, 7
    %v2180 = vsub.s32 %v2177, %v2179
    %v2181 = vrot.slane %v2173, %v2180
    %v2183 = vunpack.c.l.s4 1966171168
    %v2184 = vunpack.c.0.s8 %v2183
    %v2185 = vlaneseq
    %v2186 = vshrl.u32 %v2185, 7
    %v2187 = vsub.s32 %v2184, %v2186
    %v2188 = vrot.slane %v2174, %v2187
    %v2189 = vcombine.low %v2181, %v2188
    %v2190 = vcombine.low %v2117, %v2118
    %v2191 = vcombine.low %v2119, %v2120
    %v2192 = vcombine.low %v2121, %v2122
    %v2193 = vcombine.low %v2123, %v2124
    %v2195 = vunpack.c.l.s4 1966171168
    %v2196 = vunpack.c.0.s8 %v2195
    %v2197 = vlaneseq
    %v2198 = vshrl.u32 %v2197, 7
    %v2199 = vsub.s32 %v2196, %v2198
    %v2200 = vrot.slane %v2190, %v2199
    %v2202 = vunpack.c.l.s4 1966171168
    %v2203 = vunpack.c.0.s8 %v2202
    %v2204 = vlaneseq
    %v2205 = vshrl.u32 %v2204, 7
    %v2206 = vsub.s32 %v2203, %v2205
    %v2207 = vrot.slane %v2191, %v2206
    %v2209 = vunpack.c.l.s4 1966171168
    %v2210 = vunpack.c.0.s8 %v2209
    %v2211 = vlaneseq
    %v2212 = vshrl.u32 %v2211, 7
    %v2213 = vsub.s32 %v2210, %v2212
    %v2214 = vrot.slane %v2192, %v2213
    %v2216 = vunpack.c.l.s4 1966171168
    %v2217 = vunpack.c.0.s8 %v2216
    %v2218 = vlaneseq
    %v2219 = vshrl.u32 %v2218, 7
    %v2220 = vsub.s32 %v2217, %v2219
    %v2221 = vrot.slane %v2193, %v2220
    %v2222 = vcombine.low %v2200, %v2207
    %v2223 = vcombine.low %v2214, %v2221
    %v2225 = vunpack.c.l.s4 1966171168
    %v2226 = vunpack.c.0.s8 %v2225
    %v2227 = vlaneseq
    %v2228 = vshrl.u32 %v2227, 7
    %v2229 = vsub.s32 %v2226, %v2228
    %v2230 = vrot.slane %v2222, %v2229
    %v2232 = vunpack.c.l.s4 1966171168
    %v2233 = vunpack.c.0.s8 %v2232
    %v2234 = vlaneseq
    %v2235 = vshrl.u32 %v2234, 7
    %v2236 = vsub.s32 %v2233, %v2235
    %v2237 = vrot.slane %v2223, %v2236
    %v2238 = vcombine.low %v2230, %v2237
    %2241 = vxpose.xlu0.b32.start [1/16] %v2189, 128
    %2242 = vxpose.xlu0.b32.cont [2/16] %v2238, 128
    %2243 = vxpose.xlu0.b32.cont [3/16] 0.0, 128
    %2244 = vxpose.xlu0.b32.cont [4/16] 0.0, 128
    %2245 = vxpose.xlu0.b32.cont [5/16] 0.0, 128
    %2246 = vxpose.xlu0.b32.cont [6/16] 0.0, 128
    %2247 = vxpose.xlu0.b32.cont [7/16] 0.0, 128
    %2248 = vxpose.xlu0.b32.cont [8/16] 0.0, 128
    %2249 = vxpose.xlu0.b32.cont [9/16] 0.0, 128
    %2250 = vxpose.xlu0.b32.cont [10/16] 0.0, 128
    %2251 = vxpose.xlu0.b32.cont [11/16] 0.0, 128
    %2252 = vxpose.xlu0.b32.cont [12/16] 0.0, 128
    %2253 = vxpose.xlu0.b32.cont [13/16] 0.0, 128
    %2254 = vxpose.xlu0.b32.cont [14/16] 0.0, 128
    %2255 = vxpose.xlu0.b32.cont [15/16] 0.0, 128
    %2256 = vxpose.xlu0.b32.end [16/16] 0.0, 128
    %v2257 = vpop.trf.xlu0
    %v2258 = vpop.trf.xlu0
    %v2259 = vpop.trf.xlu0
    %v2260 = vpop.trf.xlu0
    %v2261 = vpop.trf.xlu0
    %v2262 = vpop.trf.xlu0
    %v2263 = vpop.trf.xlu0
    %v2264 = vpop.trf.xlu0
    %v2265 = vpop.trf.xlu0
    %v2266 = vpop.trf.xlu0
    %v2267 = vpop.trf.xlu0
    %v2268 = vpop.trf.xlu0
    %v2269 = vpop.trf.xlu0
    %v2270 = vpop.trf.xlu0
    %v2271 = vpop.trf.xlu0
    %v2272 = vpop.trf.xlu0
    %v2275 = vcombine.high %v2257, %v2257
    %v2277 = vunpack.c.l.s4 1966171168
    %v2278 = vunpack.c.0.s8 %v2277
    %v2279 = vlaneseq
    %v2280 = vshrl.u32 %v2279, 7
    %v2281 = vsub.s32 %v2278, %v2280
    %v2282 = vrot.slane %v2257, %v2281
    %v2284 = vunpack.c.l.s4 1966171168
    %v2285 = vunpack.c.0.s8 %v2284
    %v2286 = vlaneseq
    %v2287 = vshrl.u32 %v2286, 7
    %v2288 = vsub.s32 %v2285, %v2287
    %v2289 = vrot.slane %v2275, %v2288
    %v2290 = vcombine.high %v2282, %v2282
    %v2291 = vcombine.high %v2289, %v2289
    %v2293 = vunpack.c.l.s4 1966171168
    %v2294 = vunpack.c.0.s8 %v2293
    %v2295 = vlaneseq
    %v2296 = vshrl.u32 %v2295, 7
    %v2297 = vsub.s32 %v2294, %v2296
    %v2298 = vrot.slane %v2282, %v2297
    %v2300 = vunpack.c.l.s4 1966171168
    %v2301 = vunpack.c.0.s8 %v2300
    %v2302 = vlaneseq
    %v2303 = vshrl.u32 %v2302, 7
    %v2304 = vsub.s32 %v2301, %v2303
    %v2305 = vrot.slane %v2289, %v2304
    %v2307 = vunpack.c.l.s4 1966171168
    %v2308 = vunpack.c.0.s8 %v2307
    %v2309 = vlaneseq
    %v2310 = vshrl.u32 %v2309, 7
    %v2311 = vsub.s32 %v2308, %v2310
    %v2312 = vrot.slane %v2290, %v2311
    %v2314 = vunpack.c.l.s4 1966171168
    %v2315 = vunpack.c.0.s8 %v2314
    %v2316 = vlaneseq
    %v2317 = vshrl.u32 %v2316, 7
    %v2318 = vsub.s32 %v2315, %v2317
    %v2319 = vrot.slane %v2291, %v2318
    %v2320 = vcombine.high %v2298, %v2298
    %v2321 = vcombine.high %v2305, %v2305
    %v2322 = vcombine.high %v2312, %v2312
    %v2323 = vcombine.high %v2319, %v2319
    %v2324 = vcombine.high %v2258, %v2258
    %v2326 = vunpack.c.l.s4 1966171168
    %v2327 = vunpack.c.0.s8 %v2326
    %v2328 = vlaneseq
    %v2329 = vshrl.u32 %v2328, 7
    %v2330 = vsub.s32 %v2327, %v2329
    %v2331 = vrot.slane %v2258, %v2330
    %v2333 = vunpack.c.l.s4 1966171168
    %v2334 = vunpack.c.0.s8 %v2333
    %v2335 = vlaneseq
    %v2336 = vshrl.u32 %v2335, 7
    %v2337 = vsub.s32 %v2334, %v2336
    %v2338 = vrot.slane %v2324, %v2337
    %v2339 = vcombine.high %v2331, %v2331
    %v2340 = vcombine.high %v2338, %v2338
    %v2342 = vunpack.c.l.s4 1966171168
    %v2343 = vunpack.c.0.s8 %v2342
    %v2344 = vlaneseq
    %v2345 = vshrl.u32 %v2344, 7
    %v2346 = vsub.s32 %v2343, %v2345
    %v2347 = vrot.slane %v2331, %v2346
    %v2349 = vunpack.c.l.s4 1966171168
    %v2350 = vunpack.c.0.s8 %v2349
    %v2351 = vlaneseq
    %v2352 = vshrl.u32 %v2351, 7
    %v2353 = vsub.s32 %v2350, %v2352
    %v2354 = vrot.slane %v2338, %v2353
    %v2356 = vunpack.c.l.s4 1966171168
    %v2357 = vunpack.c.0.s8 %v2356
    %v2358 = vlaneseq
    %v2359 = vshrl.u32 %v2358, 7
    %v2360 = vsub.s32 %v2357, %v2359
    %v2361 = vrot.slane %v2339, %v2360
    %v2363 = vunpack.c.l.s4 1966171168
    %v2364 = vunpack.c.0.s8 %v2363
    %v2365 = vlaneseq
    %v2366 = vshrl.u32 %v2365, 7
    %v2367 = vsub.s32 %v2364, %v2366
    %v2368 = vrot.slane %v2340, %v2367
    %v2369 = vcombine.high %v2347, %v2347
    %v2370 = vcombine.high %v2354, %v2354
    %v2371 = vcombine.high %v2361, %v2361
    %v2372 = vcombine.high %v2368, %v2368
    %s2389 = scalar_lea.vmem [#allocation5], 112
    %2390 = vst.msk [vmem:[%s2389] sm:$0x1] %vm303, %v2298
    %2391 = vst.msk [vmem:[%s2389 + $0x1] sm:$0x1] %vm303, %v2312
    %2392 = vst.msk [vmem:[%s2389 + $0x2] sm:$0x1] %vm303, %v2320
    %2393 = vst.msk [vmem:[%s2389 + $0x3] sm:$0x1] %vm303, %v2322
    %2394 = vst.msk [vmem:[%s2389 + $0x4] sm:$0x1] %vm303, %v2305
    %2395 = vst.msk [vmem:[%s2389 + $0x5] sm:$0x1] %vm303, %v2319
    %2396 = vst.msk [vmem:[%s2389 + $0x6] sm:$0x1] %vm303, %v2321
    %2397 = vst.msk [vmem:[%s2389 + $0x7] sm:$0x1] %vm303, %v2323
    %2398 = vst.msk [vmem:[%s2389 + $0x8] sm:$0x1] %vm303, %v2347
    %2399 = vst.msk [vmem:[%s2389 + $0x9] sm:$0x1] %vm303, %v2361
    %2400 = vst.msk [vmem:[%s2389 + $0xa] sm:$0x1] %vm303, %v2369
    %2401 = vst.msk [vmem:[%s2389 + $0xb] sm:$0x1] %vm303, %v2371
    %2402 = vst.msk [vmem:[%s2389 + $0xc] sm:$0x1] %vm303, %v2354
    %2403 = vst.msk [vmem:[%s2389 + $0xd] sm:$0x1] %vm303, %v2368
    %2404 = vst.msk [vmem:[%s2389 + $0xe] sm:$0x1] %vm303, %v2370
    %2405 = vst.msk [vmem:[%s2389 + $0xf] sm:$0x1] %vm303, %v2372
    // Predicated region
    $region10: #{tpu_custom_call.1} parent=1 // pred_check
      _
    $region11: #{tpu_custom_call.1} parent=1 // pred_check_branch
      %2407 = sbr.rel (0) target = $region13
    $region12: #{tpu_custom_call.1} parent=1 // pred_region
      %s2409 = ssub.s32 2048, 2048
      %2410 = vsyncadd [#allocation4], %s2409
      %s2411 = sshll.u32 [#allocation5], 4
      %s2412 = int_to_ptr.vmem [resolvable:$true] %s2411
      %2417 = dma.vmem_to_hbm [thread:$0]  %s2412, 2048, %s1, [#allocation4], 16, 16, 1
    $region13: #{tpu_custom_call.1} parent=1 // pred_fallthru
      _
    // Predicated region
    $region14: #{tpu_custom_call.1} parent=1 // pred_check
      _
    $region15: #{tpu_custom_call.1} parent=1 // pred_check_branch
      %2419 = sbr.rel (0) target = $region17
    $region16: #{tpu_custom_call.1} parent=1 // pred_region
      %2420 = dma.done [#allocation4], 2048
    $region17: #{tpu_custom_call.1} parent=1 // pred_fallthru
      _
    %2421 = vsyncpa [#allocation3], 1
    %2422 = vsyncpa [#allocation4], 1

</llo_original>
